<compile_context>
chip_gen: v5e
topology: v5e:2x2
jax: 0.10.0
libtpu: 0.0.40
codegen_flags: <defaults>
</compile_context>

<pallas_src>
import math

import jax
import jax.numpy as jnp
from jax.experimental import pallas as pl
from jax.experimental.pallas import tpu as pltpu

FREQUENCIES = (1.0, 24.0)          # module default `frequencies=[1, 24]`
_TWO_PI = 2.0 * math.pi
_NCOEF = 2 + 2 * len(FREQUENCIES)  # [tn, 1, sin(f1), sin(f2), cos(f1), cos(f2)]
_KPAD = ((_NCOEF + 7) // 8) * 8    # pad contraction dim to a sublane multiple


def time_embedding_kernel(ts_ref, mask_ref, w8_ref, out_ref):
    """One grid step: Bt batch rows -> (Bt*S, D) lane-dense output block.

    ts_ref, mask_ref : (Bt, S)    per-step blocks (DMA'd by BlockSpec)
    w8_ref           : (KPAD, D)  packed combiner weights
                       row 0      = w1 @ Wc[:D]            (coeff: m*tn)
                       row 1      = b1 @ Wc[:D] + bc       (coeff: m)
                       rows 2..5  = sin/cos rows of Wc     (coeff: m*sin, m*cos)
                       rows 6..7  = zeros                  (padding)
    out_ref          : (Bt*S, D)
    """
    Bt, S = ts_ref.shape
    kpad = w8_ref.shape[0]

    t = ts_ref[...]                                       # (Bt, S)
    m = mask_ref[...]                                     # (Bt, S)

    # Per-row max normalization.  NOTE: only correct because the block spans
    # the full sequence axis S (we tile batch only); if S were ever tiled the
    # row max would have to be precomputed in the wrapper.
    t_max = jnp.max(t, axis=1, keepdims=True)             # (Bt, 1)
    tn = t * pl.reciprocal(t_max + 1e-8)                  # (Bt, S)

    # Coefficients in the small (Bt, S) domain; the mask is folded in here so
    # the big (Bt*S, D) domain is a single MXU matmul + the store, leaving the
    # vector path free for the HBM writeback.
    cols = [m * tn, m]
    for f in FREQUENCIES:
        cols.append(m * jnp.sin(_TWO_PI * f * tn))
    for f in FREQUENCIES:
        cols.append(m * jnp.cos(_TWO_PI * f * tn))
    while len(cols) < kpad:                               # zero-pad to KPAD
        cols.append(jnp.zeros_like(tn))
    coeff = jnp.concatenate([c[:, :, None] for c in cols], axis=-1)  # (Bt,S,KPAD)
    coeff = coeff.reshape(Bt * S, kpad)                   # (Bt*S, KPAD)

    out = jnp.dot(coeff, w8_ref[...],
                  precision=jax.lax.Precision.HIGHEST,    # f32 parity with PyTorch
                  preferred_element_type=jnp.float32)
    out_ref[...] = out.astype(out_ref.dtype)


def _tpu_vmem_bytes():
    try:
        return int(pltpu.get_tpu_info().vmem_capacity_bytes)
    except Exception:
        return 64 * 1024 * 1024     # conservative: v7x per-TensorCore VMEM


def _pick_batch_tile(B, S, D, tile_budget_bytes):
    """Largest divisor of B whose (Bt*S, D) f32 output tile fits the budget,
    preferring sublane-aligned blocks and an even grid-step count >= 4."""
    row_bytes = S * D * 4
    cap = max(1, min(B, tile_budget_bytes // row_bytes))
    if B >= 4:
        cap = min(cap, max(1, B // 4))   # >= 4 grid steps (megacore + pipeline)
    elif B >= 2:
        cap = min(cap, B // 2)
    best = None
    for bt in range(1, cap + 1):
        if B % bt:
            continue
        steps = B // bt
        key = ((bt * S) % 8 == 0 or bt == B,   # aligned output block rows
               bt % 8 == 0 or bt == B,         # aligned input block rows
               steps % 2 == 0,                 # even split across 2 TensorCores
               bt)                             # then: biggest tile
        if best is None or key > best[0]:
            best = (key, bt)
    return best[1]


def time_embedding(timestamps, mask, w1, b1, wc, bc, *, out_dtype=jnp.float32):
    """timestamps, mask: [B, S]; w1, b1, bc: [1, D]; wc: [D+2F, D] -> [B, S, D].

    Pass out_dtype=jnp.bfloat16 to halve the HBM writeback if downstream allows.
    """
    B, S = timestamps.shape
    D = w1.shape[-1]
    F2 = 2 * len(FREQUENCIES)
    assert wc.shape == (D + F2, D)
    if mask is None:
        mask = jnp.ones((B, S), jnp.float32)

    # Fold Linear(1, D) into the combiner and pack everything into one (KPAD, D)
    # weight block (tiny matmuls, done once outside the kernel).
    wc = wc.astype(jnp.float32)
    wc_cont = wc[:D, :]
    v1 = jnp.dot(w1.astype(jnp.float32), wc_cont,
                 precision=jax.lax.Precision.HIGHEST).reshape(1, D)
    v0 = (jnp.dot(b1.astype(jnp.float32), wc_cont,
                  precision=jax.lax.Precision.HIGHEST)
          + bc.astype(jnp.float32)).reshape(1, D)
    wr = wc[D:, :]                                        # (2F, D) sin/cos rows
    w8 = jnp.concatenate(
        [v1, v0, wr, jnp.zeros((_KPAD - _NCOEF, D), jnp.float32)], axis=0)

    ts = timestamps.astype(jnp.float32)
    mk = mask.astype(jnp.float32)

    # Generation-aware tiling / VMEM budget.
    vmem_cap = _tpu_vmem_bytes()
    tile_budget = min(16 << 20, max(1 << 20, (vmem_cap // 2 - (4 << 20)) // 3))
    Bt = _pick_batch_tile(B, S, D, tile_budget)
    tile_bytes = Bt * S * D * 4
    vmem_limit = int(min(0.9 * vmem_cap, max(32 << 20, 4 * tile_bytes + (8 << 20))))

    out_itemsize = jnp.dtype(out_dtype).itemsize
    cost = pl.CostEstimate(
        flops=2 * B * S * _KPAD * D + 16 * B * S,
        transcendentals=F2 * B * S,
        bytes_accessed=B * S * D * out_itemsize + 2 * B * S * 4 + _KPAD * D * 4)

    out2d = pl.pallas_call(
        time_embedding_kernel,
        out_shape=jax.ShapeDtypeStruct((B * S, D), out_dtype),
        grid=(B // Bt,),
        in_specs=[
            pl.BlockSpec((Bt, S), lambda g: (g, 0)),      # timestamps rows
            pl.BlockSpec((Bt, S), lambda g: (g, 0)),      # mask rows
            pl.BlockSpec((_KPAD, D), lambda g: (0, 0)),   # packed weights (resident)
        ],
        out_specs=pl.BlockSpec((Bt * S, D), lambda g: (g, 0)),
        compiler_params=pltpu.CompilerParams(
            dimension_semantics=("parallel",),
            vmem_limit_bytes=vmem_limit),
        cost_estimate=cost,
    )(ts, mk, w8)
    return out2d.reshape(B, S, D)   # free: row-major split of the leading dim


if __name__ == "__main__":
    key = jax.random.PRNGKey(0)
    B, S, D = 32, 16, 128
    F2 = 2 * len(FREQUENCIES)

    k1, k2, k3, k4, k5, k6 = jax.random.split(key, 6)
    timestamps = jax.random.uniform(k1, (B, S), jnp.float32, 0.0, 100.0)
    mask = (jax.random.uniform(k2, (B, S)) > 0.2).astype(jnp.float32)

    # Deterministic synthetic parameters (shapes from TimeEmbedding.__init__):
    #   time_embedding_layer: Linear(1, D)  -> weight (D,1) stored here as (1,D)
    #   combiner: Linear(D + 2F, D)         -> weight (D, D+2F) stored here as (D+2F, D)
    w1 = 0.1 * jax.random.normal(k3, (1, D), jnp.float32)
    b1 = 0.1 * jax.random.normal(k4, (1, D), jnp.float32)
    wc = 0.1 * jax.random.normal(k5, (D + F2, D), jnp.float32)
    bc = 0.1 * jax.random.normal(k6, (1, D), jnp.float32)

    out = jax.block_until_ready(time_embedding(timestamps, mask, w1, b1, wc, bc))

    # Pure-JAX reference (mirrors the PyTorch forward).
    tn = timestamps / (jnp.max(timestamps, axis=1, keepdims=True) + 1e-8)
    tn3 = tn[..., None]
    cont = tn3 * w1[0][None, None, :] + b1[0]
    sincos = jnp.concatenate(
        [jnp.sin(2 * jnp.pi * tn3 * f) for f in FREQUENCIES] +
        [jnp.cos(2 * jnp.pi * tn3 * f) for f in FREQUENCIES], axis=-1)
    feats = jnp.concatenate([cont, sincos], axis=-1)
    ref = (jnp.dot(feats, wc, precision=jax.lax.Precision.HIGHEST)
           + bc[0]) * mask[..., None]

    assert out.shape == (B, S, D)
    err = float(jnp.max(jnp.abs(out - ref)))
    # Tolerance covers reciprocal-vs-divide ulp differences amplified by the
    # 2*pi*24 frequency inside sin/cos, plus matmul re-association.
    assert jnp.allclose(out, ref, atol=1e-4, rtol=1e-4), err
    print("KERNEL_OK")
</pallas_src>

<mosaic_0001>
module attributes {stable_mosaic.version = 11 : i64} {
  func.func @time_embedding_kernel(%arg0: i32, %arg1: memref<8x16xf32, #tpu.memory_space<vmem>>, %arg2: memref<8x16xf32, #tpu.memory_space<vmem>>, %arg3: memref<8x128xf32, #tpu.memory_space<vmem>>, %arg4: memref<128x128xf32, #tpu.memory_space<vmem>>) attributes {dimension_semantics = [#tpu.dimension_semantics<parallel>], iteration_bounds = array<i64: 4>, scalar_prefetch = 0 : i64, scratch_operands = 0 : i64, tpu.core_type = #tpu.core_type<tc>, window_params = [{transform_indices = @transform_0, window_bounds = array<i64: 8, 16>}, {transform_indices = @transform_1, window_bounds = array<i64: 8, 16>}, {pipeline_mode = #tpu.pipeline_mode<synchronous>, transform_indices = @transform_2, window_bounds = array<i64: 8, 128>}, {transform_indices = @transform_3, window_bounds = array<i64: 128, 128>}]} {
    %c0 = arith.constant 0 : index
    %c0_0 = arith.constant 0 : index
    %0 = vector.load %arg1[%c0, %c0_0] : memref<8x16xf32, #tpu.memory_space<vmem>>, vector<8x16xf32>
    %c0_1 = arith.constant 0 : index
    %c0_2 = arith.constant 0 : index
    %1 = vector.load %arg2[%c0_1, %c0_2] : memref<8x16xf32, #tpu.memory_space<vmem>>, vector<8x16xf32>
    %cst = arith.constant dense<0xFF800000> : vector<8xf32>
    %2 = vector.multi_reduction <maximumf>, %0, %cst [1] : vector<8x16xf32> to vector<8xf32>
    %3 = vector.shape_cast %2 : vector<8xf32> to vector<8x1xf32>
    %cst_3 = arith.constant 9.99999993E-9 : f32
    %4 = vector.broadcast %cst_3 : f32 to vector<8x1xf32>
    %5 = arith.addf %3, %4 : vector<8x1xf32>
    %6 = tpu.reciprocal %5 : vector<8x1xf32> -> vector<8x1xf32>
    %7 = vector.broadcast %6 : vector<8x1xf32> to vector<8x16xf32>
    %8 = arith.mulf %0, %7 : vector<8x16xf32>
    %9 = arith.mulf %1, %8 : vector<8x16xf32>
    %cst_4 = arith.constant 6.28318548 : f32
    %10 = vector.broadcast %cst_4 : f32 to vector<8x16xf32>
    %11 = arith.mulf %10, %8 : vector<8x16xf32>
    %12 = math.sin %11 : vector<8x16xf32>
    %13 = arith.mulf %1, %12 : vector<8x16xf32>
    %cst_5 = arith.constant 150.796448 : f32
    %14 = vector.broadcast %cst_5 : f32 to vector<8x16xf32>
    %15 = arith.mulf %14, %8 : vector<8x16xf32>
    %16 = math.sin %15 : vector<8x16xf32>
    %17 = arith.mulf %1, %16 : vector<8x16xf32>
    %cst_6 = arith.constant 6.28318548 : f32
    %18 = vector.broadcast %cst_6 : f32 to vector<8x16xf32>
    %19 = arith.mulf %18, %8 : vector<8x16xf32>
    %20 = math.cos %19 : vector<8x16xf32>
    %21 = arith.mulf %1, %20 : vector<8x16xf32>
    %cst_7 = arith.constant 150.796448 : f32
    %22 = vector.broadcast %cst_7 : f32 to vector<8x16xf32>
    %23 = arith.mulf %22, %8 : vector<8x16xf32>
    %24 = math.cos %23 : vector<8x16xf32>
    %25 = arith.mulf %1, %24 : vector<8x16xf32>
    %cst_8 = arith.constant 0.000000e+00 : f32
    %26 = vector.broadcast %cst_8 : f32 to vector<8x16xf32>
    %cst_9 = arith.constant 0.000000e+00 : f32
    %27 = vector.broadcast %cst_9 : f32 to vector<8x16xf32>
    %28 = vector.shape_cast %9 : vector<8x16xf32> to vector<8x16x1xf32>
    %29 = vector.shape_cast %1 : vector<8x16xf32> to vector<8x16x1xf32>
    %30 = vector.shape_cast %13 : vector<8x16xf32> to vector<8x16x1xf32>
    %31 = vector.shape_cast %17 : vector<8x16xf32> to vector<8x16x1xf32>
    %32 = vector.shape_cast %21 : vector<8x16xf32> to vector<8x16x1xf32>
    %33 = vector.shape_cast %25 : vector<8x16xf32> to vector<8x16x1xf32>
    %34 = vector.shape_cast %26 : vector<8x16xf32> to vector<8x16x1xf32>
    %35 = vector.shape_cast %27 : vector<8x16xf32> to vector<8x16x1xf32>
    %36 = tpu.concatenate %28, %29, %30, %31, %32, %33, %34, %35 in 2 : vector<8x16x1xf32>, vector<8x16x1xf32>, vector<8x16x1xf32>, vector<8x16x1xf32>, vector<8x16x1xf32>, vector<8x16x1xf32>, vector<8x16x1xf32>, vector<8x16x1xf32> -> vector<8x16x8xf32>
    %37 = vector.shape_cast %36 : vector<8x16x8xf32> to vector<128x8xf32>
    %c0_10 = arith.constant 0 : index
    %c0_11 = arith.constant 0 : index
    %38 = vector.load %arg3[%c0_10, %c0_11] : memref<8x128xf32, #tpu.memory_space<vmem>>, vector<8x128xf32>
    %cst_12 = arith.constant dense<0.000000e+00> : vector<128x128xf32>
    %39 = tpu.matmul %37, %38, %cst_12 {dimension_numbers = #tpu.dot_dimension_numbers<[1], [0], [0], [1], [0, 0, 1, 1], [], []>, precision = #tpu.contract_precision<fp32>} : vector<128x8xf32>, vector<8x128xf32>, vector<128x128xf32> -> vector<128x128xf32>
    %c0_13 = arith.constant 0 : index
    %c0_14 = arith.constant 0 : index
    %40 = vector.load %arg4[%c0_13, %c0_14] : memref<128x128xf32, #tpu.memory_space<vmem>>, vector<128x128xf32>
    tpu.vector_store %arg4[%c0_13, %c0_14], %39 {strides = array<i32>} : memref<128x128xf32, #tpu.memory_space<vmem>>, vector<128x128xf32>,
    return
  }
  func.func @transform_0(%arg0: i32) -> (i32, i32) {
    %c0_i32 = arith.constant 0 : i32
    %c0_i32_0 = arith.constant 0 : i32
    return %arg0, %c0_i32 : i32, i32
  }
  func.func @transform_1(%arg0: i32) -> (i32, i32) {
    %c0_i32 = arith.constant 0 : i32
    %c0_i32_0 = arith.constant 0 : i32
    return %arg0, %c0_i32 : i32, i32
  }
  func.func @transform_2(%arg0: i32) -> (i32, i32) {
    %c0_i32 = arith.constant 0 : i32
    %c0_i32_0 = arith.constant 0 : i32
    %c0_i32_1 = arith.constant 0 : i32
    return %c0_i32, %c0_i32_0 : i32, i32
  }
  func.func @transform_3(%arg0: i32) -> (i32, i32) {
    %c0_i32 = arith.constant 0 : i32
    %c0_i32_0 = arith.constant 0 : i32
    return %arg0, %c0_i32 : i32, i32
  }
}

</mosaic_0001>

<llo_original>
// kernel: tpu_custom_call.1
$region0: #{tpu_custom_call.1}
  #allocation0 [shape = 'u32[]', space=smem, size = 0x4, offset = 0x4, fixed_abs, tag = 'smem constant byte address 0x4 - core index']
  #allocation1 [shape = 'u32[72,128]{1,0:T(1,128)}', space=vmem, size = 0x9000, scoped, tag = 'internal scratch']
  %s0 = inlined_call_operand.vmem [shape: f32[32,16], index: 0, kind: input, shape index: {}]
  %s1 = inlined_call_operand.vmem [shape: f32[32,16], index: 1, kind: input, shape index: {}]
  %s2 = inlined_call_operand.vmem [shape: f32[8,128], index: 2, kind: input, shape index: {}]
  %s3 = inlined_call_operand.hbm [shape: f32[512,128], index: 3, kind: output, shape index: {}]
  %s4 = sld [smem:[#allocation0]]
  $region45: #{tpu_custom_call.1} parent=0
    _
  %s6 = ssub.s32 1, %s4
  %s7 = scalar_select 0, %s6, %s4
  $region1: #{tpu_custom_call.1} parent=0
    #allocation2 [shape = 'u8[131072]{0}', space=vmem, size = 0x20000, scoped, tag = 'output window, operand 0']
    #allocation3 [shape = 's32[2]{0}', space=sflag, size = 0x8, scoped, tag = 'scoped memory for tpu_custom_call.1']
    %8 = vsyncpa [#allocation3], 0
    %s9 = scalar_lea.sflag [#allocation3], 1
    %10 = vsyncpa %s9, 0
    loop: start=0, step=1, limit=6
    $region2: #{tpu_custom_call.1} parent=1 // loop_pre_header
      _
    $region3: #{tpu_custom_call.1} parent=1 // loop_header
      %s12 = sphi 0, %s16
      %p13 = scmp.ge.s32.totalorder %s12, 6
      %s22 = sphi 0, %s24
      %s25 = sphi 0, %s22
      %s26 = sphi 0, %s25
      %s42 = sphi 0, %s26
      %s48 = sphi 0, %s50
      %s51 = sphi 0, %s48
      %s52 = sphi 0, %s51
      %s68 = sphi 0, %s52
      %s72 = sphi 0, %s72
      %s74 = sphi 0, %s72
      %s75 = sphi 0, %s74
      %s89 = sphi 0, %s75
      %s95 = sphi 0, %s97
      %s98 = sphi 0, %s95
      %s99 = sphi 0, %s98
      %s115 = sphi 0, %s99
    $region4: #{tpu_custom_call.1} parent=1 // loop_header_branch
      %15 = sbr.rel (%p13) target = $region8
    $region5: #{tpu_custom_call.1} parent=1 // loop_body
      %s17 = ssub.s32 %s12, 1
      %s18 = ssub.s32 %s12, 2
      %s19 = sadd.s32 %s12, 1
      %s20 = ssub.s32 %s12, %s19
      %p21 = scmp.eq.s32.totalorder %s20, 0
      %s23 = sadd.s32 %s22, 1
      %s24 = scalar_select %p21, %s22, %s23
      %p27 = pneg %p21
      %p28 = scmp.eq.s32.totalorder %s12, 3
      %p29 = por %p27, %p28
      %p30 = scmp.ne.s32.totalorder %s22, %s25
      %p31 = scmp.eq.s32.totalorder %s12, 0
      %p32 = por %p30, %p31
      %p33 = scmp.ne.s32.totalorder %s22, %s25
      %p34 = scmp.eq.s32.totalorder %s17, 3
      %p35 = por %p33, %p34
      %p36 = scmp.ne.s32.totalorder %s25, %s26
      %p37 = scmp.eq.s32.totalorder %s17, 0
      %p38 = por %p36, %p37
      %p39 = scmp.ne.s32.totalorder %s25, %s26
      %p40 = scmp.eq.s32.totalorder %s18, 3
      %p41 = por %p39, %p40
      %p43 = scmp.ne.s32.totalorder %s26, %s42
      %p44 = scmp.eq.s32.totalorder %s18, 0
      %p45 = por %p43, %p44
      %s46 = ssub.s32 %s12, %s19
      %p47 = scmp.eq.s32.totalorder %s46, 0
      %s49 = sadd.s32 %s48, 1
      %s50 = scalar_select %p47, %s48, %s49
      %p53 = pneg %p47
      %p54 = scmp.eq.s32.totalorder %s12, 3
      %p55 = por %p53, %p54
      %p56 = scmp.ne.s32.totalorder %s48, %s51
      %p57 = scmp.eq.s32.totalorder %s12, 0
      %p58 = por %p56, %p57
      %p59 = scmp.ne.s32.totalorder %s48, %s51
      %p60 = scmp.eq.s32.totalorder %s17, 3
      %p61 = por %p59, %p60
      %p62 = scmp.ne.s32.totalorder %s51, %s52
      %p63 = scmp.eq.s32.totalorder %s17, 0
      %p64 = por %p62, %p63
      %p65 = scmp.ne.s32.totalorder %s51, %s52
      %p66 = scmp.eq.s32.totalorder %s18, 3
      %p67 = por %p65, %p66
      %p69 = scmp.ne.s32.totalorder %s52, %s68
      %p70 = scmp.eq.s32.totalorder %s18, 0
      %p71 = por %p69, %p70
      %s73 = sadd.s32 %s72, 1
      %p76 = scmp.eq.s32.totalorder %s12, 3
      %p77 = scmp.ne.s32.totalorder %s72, %s74
      %p78 = scmp.eq.s32.totalorder %s12, 0
      %p79 = por %p77, %p78
      %p80 = scmp.ne.s32.totalorder %s72, %s74
      %p81 = scmp.eq.s32.totalorder %s17, 3
      %p82 = por %p80, %p81
      %p83 = scmp.ne.s32.totalorder %s74, %s75
      %p84 = scmp.eq.s32.totalorder %s17, 0
      %p85 = por %p83, %p84
      %p86 = scmp.ne.s32.totalorder %s74, %s75
      %p87 = scmp.eq.s32.totalorder %s18, 3
      %p88 = por %p86, %p87
      %p90 = scmp.ne.s32.totalorder %s75, %s89
      %p91 = scmp.eq.s32.totalorder %s18, 0
      %p92 = por %p90, %p91
      %s93 = ssub.s32 %s12, %s19
      %p94 = scmp.eq.s32.totalorder %s93, 0
      %s96 = sadd.s32 %s95, 1
      %s97 = scalar_select %p94, %s95, %s96
      %p100 = pneg %p94
      %p101 = scmp.eq.s32.totalorder %s12, 3
      %p102 = por %p100, %p101
      %p103 = scmp.ne.s32.totalorder %s95, %s98
      %p104 = scmp.eq.s32.totalorder %s12, 0
      %p105 = por %p103, %p104
      %p106 = scmp.ne.s32.totalorder %s95, %s98
      %p107 = scmp.eq.s32.totalorder %s17, 3
      %p108 = por %p106, %p107
      %p109 = scmp.ne.s32.totalorder %s98, %s99
      %p110 = scmp.eq.s32.totalorder %s17, 0
      %p111 = por %p109, %p110
      %p112 = scmp.ne.s32.totalorder %s98, %s99
      %p113 = scmp.eq.s32.totalorder %s18, 3
      %p114 = por %p112, %p113
      %p116 = scmp.ne.s32.totalorder %s99, %s115
      %p117 = scmp.eq.s32.totalorder %s18, 0
      %p118 = por %p116, %p117
      %p119 = scmp.le.s32.totalorder 1, %s12
      %p120 = scmp.lt.s32.totalorder %s12, 5
      %p121 = pnand %p119, %p120
      %p122 = pneg %p121
      // Predicated region
      $region9: #{tpu_custom_call.1} parent=5 // pred_check
        _
      $region10: #{tpu_custom_call.1} parent=5 // pred_check_branch
        %124 = sbr.rel (%p121) target = $region12
      $region11: #{tpu_custom_call.1} parent=5 // pred_region
        %s125 = ssub.s32 %s12, 1
        // Predicated region
        $region13: #{tpu_custom_call.1} parent=11 // pred_check
          %p126 = pneg %p85
        $region14: #{tpu_custom_call.1} parent=11 // pred_check_branch
          %128 = sbr.rel (%p126) target = $region16
        $region15: #{tpu_custom_call.1} parent=11 // pred_region
          _
        $region16: #{tpu_custom_call.1} parent=11 // pred_fallthru
          _
      $region12: #{tpu_custom_call.1} parent=5 // pred_fallthru
        _
      %p129 = scmp.lt.s32.totalorder %s12, 4
      // Predicated region
      $region17: #{tpu_custom_call.1} parent=5 // pred_check
        %p130 = pneg %p129
      $region18: #{tpu_custom_call.1} parent=5 // pred_check_branch
        %132 = sbr.rel (%p130) target = $region20
      $region19: #{tpu_custom_call.1} parent=5 // pred_region
        // Predicated region
        $region21: #{tpu_custom_call.1} parent=19 // pred_check
          %p133 = pneg %p32
        $region22: #{tpu_custom_call.1} parent=19 // pred_check_branch
          %135 = sbr.rel (%p133) target = $region24
        $region23: #{tpu_custom_call.1} parent=19 // pred_region
          %p136 = scmp.lt.s32.totalorder %s12, 3
          %s137 = scalar_select %p136, %s12, 3
          %s138 = smul.addr %s137, 8
          %s139 = scalar_lea.vmem %s0, %s138
        $region24: #{tpu_custom_call.1} parent=19 // pred_fallthru
          _
        // Predicated region
        $region25: #{tpu_custom_call.1} parent=19 // pred_check
          %p140 = pneg %p58
        $region26: #{tpu_custom_call.1} parent=19 // pred_check_branch
          %142 = sbr.rel (%p140) target = $region28
        $region27: #{tpu_custom_call.1} parent=19 // pred_region
          %p143 = scmp.lt.s32.totalorder %s12, 3
          %s144 = scalar_select %p143, %s12, 3
          %s145 = smul.addr %s144, 8
          %s146 = scalar_lea.vmem %s1, %s145
        $region28: #{tpu_custom_call.1} parent=19 // pred_fallthru
          _
      $region20: #{tpu_custom_call.1} parent=5 // pred_fallthru
        _
      %p147 = scmp.le.s32.totalorder 1, %s12
      %p148 = scmp.lt.s32.totalorder %s12, 5
      %p149 = pnand %p147, %p148
      %p150 = pneg %p149
      // Predicated region
      $region29: #{tpu_custom_call.1} parent=5 // pred_check
        _
      $region30: #{tpu_custom_call.1} parent=5 // pred_check_branch
        %152 = sbr.rel (%p149) target = $region32
      $region31: #{tpu_custom_call.1} parent=5 // pred_region
        %s153 = ssub.s32 %s12, 1
        %p154 = scmp.lt.s32.totalorder %s17, 3
        %s155 = scalar_select %p154, %s17, 3
        %s156 = smul.addr %s155, 8
        %s157 = scalar_lea.vmem %s0, %s156
        %p158 = pneg %p38
        %p159 = pneg %p35
        %p160 = scmp.lt.s32.totalorder %s17, 3
        %s161 = scalar_select %p160, %s17, 3
        %s162 = smul.addr %s161, 8
        %s163 = scalar_lea.vmem %s1, %s162
        %p164 = pneg %p64
        %p165 = pneg %p61
        %p166 = pneg %p85
        %p167 = pneg %p82
        %p168 = pneg %p111
        %p169 = pneg %p108
        %s170 = sand.u32 %s98, 1
        %s171 = scalar_lea.sflag [#allocation3], %s170
        %s172 = sand.u32 %s98, 1
        %s173 = smul.addr %s172, 128
        %s174 = scalar_lea.vmem [#allocation2], %s173
        %p175 = scmp.lt.s32.totalorder %s17, 3
        %s176 = scalar_select %p175, %s17, 3
        %s177 = smul.addr %s176, 8
        %s178 = scalar_lea.vmem %s0, %s177
        %p179 = scmp.lt.s32.totalorder %s17, 3
        %s180 = scalar_select %p179, %s17, 3
        %s181 = smul.addr %s180, 8
        %s182 = scalar_lea.vmem %s1, %s181
        %s183 = smul.u32 16, %s17
        %v184 = vld [vmem:[%s178] sm:$0xff]
        %v185 = vld [vmem:[%s182] sm:$0xff]
        %vm186 = vcmask 130048
        %v187 = vsel %vm186, %v184, -inf
        %188 = vmax.xlane.f32.xlu0 %v187
        %v189 = vpop.xlane.xlu0 %188
        %v190 = vadd.f32 %v189, 1e-08
        %v191 = vrcp.pop %v190
        %v192 = vmul.f32 %v190, %v191
        %v193 = vsub.f32 1.0, %v192
        %v194 = vmul.f32 %v191, %v193
        %v195 = vadd.f32 %v191, %v194
        %vm196 = vweird.f32 %v190
        %vm197 = vweird.f32 %v191
        %vm198 = vmor %vm196, %vm197
        %v199 = vsel %vm198, %v191, %v195
        %v200 = vand.u32 2147483647, %v190
        %vm201 = vcmp.eq.f32.partialorder %v200, 8.507059e+37
        %v202 = vand.u32 %v190, 2147483648
        %v203 = vor.u32 1.1754944e-38, %v202
        %v204 = vsel %vm201, %v203, %v199
        %v205 = vmul.f32 %v184, %v204
        %v206 = vmul.f32 %v185, %v205
        %v207 = vmul.f32 %v205, 6.2831855
        %v208 = vand.u32 2147483647, %v207
        %vm209 = vcmp.le.f32.partialorder %v208, 0.7853982
        %vm210 = vcmp.lt.s32.totalorder %v207, 0
        %v211 = vand.u32 %v207, 2139095040
        %v212 = vshrl.u32 %v211, 23
        %v213 = vsub.s32 %v212, 127
        %v214 = vand.u32 2147483647, %v207
        %v215 = vand.u32 %v214, 8388607
        %v216 = vor.u32 %v215, 8388608
        %v217 = vsub.s32 0, %v216
        %v218 = vadd.s32 %v213, 1
        %vm219 = vcmp.gt.s32.totalorder %v218, 0
        %v220 = vsel %vm219, %v218, 0
        %v221 = vshrl.u32 %v220, 5
        %v222 = vand.u32 %v220, 31
        %v223 = vsub.s32 32, %v222
        %v224 = vshrl.u32 683565275, %v223
        %v225 = vshll.u32 683565275, %v222
        %v226 = vshrl.u32 2475754826, %v223
        %v227 = vor.u32 %v225, %v226
        %v228 = vshll.u32 2475754826, %v222
        %v229 = vshrl.u32 2131351028, %v223
        %v230 = vor.u32 %v228, %v229
        %v231 = vshll.u32 2131351028, %v222
        %v232 = vshrl.u32 2102212464, %v223
        %v233 = vor.u32 %v231, %v232
        %v234 = vshll.u32 2102212464, %v222
        %v235 = vshrl.u32 920167782, %v223
        %v236 = vor.u32 %v234, %v235
        %v237 = vshll.u32 920167782, %v222
        %v238 = vshrl.u32 1326507024, %v223
        %v239 = vor.u32 %v237, %v238
        %vm240 = vcmp.lt.s32.totalorder %v221, 1
        %vm241 = vcmp.lt.s32.totalorder %v221, 2
        %vm242 = vcmp.lt.s32.totalorder %v221, 3
        %vm243 = vcmp.lt.s32.totalorder %v221, 4
        %v244 = vsel %vm240, %v224, %v227
        %v245 = vsel %vm243, %v233, 2102212464
        %v246 = vsel %vm242, %v230, %v245
        %v247 = vsel %vm241, %v244, %v246
        %v248 = vsel %vm240, %v227, %v230
        %v249 = vsel %vm243, %v236, 920167782
        %v250 = vsel %vm242, %v233, %v249
        %v251 = vsel %vm241, %v248, %v250
        %v252 = vsel %vm240, %v230, %v233
        %v253 = vsel %vm243, %v239, 1326507024
        %v254 = vsel %vm242, %v236, %v253
        %v255 = vsel %vm241, %v252, %v254
        %v256 = vshll.u32 %v216, 8
        %v257 = vand.u32 %v256, 65535
        %v258 = vshrl.u32 %v256, 16
        %v259 = vand.u32 %v255, 65535
        %v260 = vshrl.u32 %v255, 16
        %v261 = vmul.u32 %v257, %v259
        %v262 = vmul.u32 %v257, %v260
        %v263 = vmul.u32 %v258, %v259
        %v264 = vmul.u32 %v258, %v260
        %v265 = vshll.u32 %v262, 16
        %v266 = vshrl.u32 %v262, 16
        %v267 = vshll.u32 %v263, 16
        %v268 = vshrl.u32 %v263, 16
        %vm269 = vc.u32 %v261, %v265
        %v270 = vsel %vm269, 1, 0
        %v271 = vadd.s32 %v261, %v265
        %v272 = vadd.s32 %v264, %v270
        %vm273 = vc.u32 %v271, %v267
        %v274 = vsel %vm273, 1, 0
        %v275 = vadd.s32 %v271, %v267
        %v276 = vadd.s32 %v272, %v274
        %v277 = vadd.s32 %v276, %v266
        %v278 = vadd.s32 %v277, %v268
        %v279 = vand.u32 %v256, 65535
        %v280 = vshrl.u32 %v256, 16
        %v281 = vand.u32 %v251, 65535
        %v282 = vshrl.u32 %v251, 16
        %v283 = vmul.u32 %v279, %v281
        %v284 = vmul.u32 %v279, %v282
        %v285 = vmul.u32 %v280, %v281
        %v286 = vmul.u32 %v280, %v282
        %v287 = vshll.u32 %v284, 16
        %v288 = vshrl.u32 %v284, 16
        %v289 = vshll.u32 %v285, 16
        %v290 = vshrl.u32 %v285, 16
        %vm291 = vc.u32 %v283, %v287
        %v292 = vsel %vm291, 1, 0
        %v293 = vadd.s32 %v283, %v287
        %v294 = vadd.s32 %v286, %v292
        %vm295 = vc.u32 %v293, %v289
        %v296 = vsel %vm295, 1, 0
        %v297 = vadd.s32 %v293, %v289
        %v298 = vadd.s32 %v294, %v296
        %v299 = vadd.s32 %v298, %v288
        %v300 = vadd.s32 %v299, %v290
        %v301 = vmul.u32 %v256, %v247
        %v302 = vadd.s32 %v278, %v297
        %vm303 = vc.u32 %v278, %v297
        %v304 = vadd.s32 %v300, 1
        %v305 = vsel %vm303, %v304, %v300
        %v306 = vadd.s32 %v301, %v305
        %v307 = vadd.s32 %v306, 536870912
        %v308 = vshrl.u32 %v307, 30
        %v309 = vshll.u32 %v308, 30
        %v310 = vsub.s32 %v306, %v309
        %vm311 = vcmp.lt.s32.totalorder %v310, 0
        %v312 = vsub.s32 0, %v310
        %v313 = vsel %vm311, %v312, %v310
        %v314 = vclz %v313
        %v315 = vsub.s32 %v314, 2
        %vm316 = vcmp.gt.s32.totalorder 0, %v315
        %v317 = vsel %vm316, 0, %v315
        %v318 = vsub.s32 32, %v317
        %v319 = vshll.u32 %v310, %v317
        %v320 = vshrl.u32 %v302, %v318
        %v321 = vor.u32 %v319, %v320
        %v322 = vsub.s32 4294967266, %v317
        %v323 = vadd.s32 %v322, 127
        %v324 = vshll.u32 %v323, 23
        %v325 = vor.u32 4788187, %v324
        %v326 = vand.u32 2147483647, %v325
        %v328 = vcvt.s32.f32 %v321
        %v329 = vmul.f32 %v328, %v326
        %v330 = vxor.u32 %v329, 2147483648
        %v331 = vsel %vm210, %v330, %v329
        %v332 = vsub.s32 4, %v308
        %v333 = vsel %vm210, %v332, %v308
        %v334 = vsel %vm209, %v207, %v331
        %v335 = vsel %vm209, 0, %v333
        %v336 = vmul.f32 %v334, %v334
        %v337 = vmul.f32 %v336, -0.001358992
        %v338 = vadd.f32 %v337, 0.041655596
        %v339 = vmul.f32 %v336, %v338
        %v340 = vadd.f32 %v339, -0.4999988
        %v341 = vmul.f32 %v336, %v340
        %v342 = vadd.f32 1.0, %v341
        %v343 = vmul.f32 %v334, %v334
        %v344 = vmul.f32 %v343, -0.00019511016
        %v345 = vadd.f32 %v344, 0.008332121
        %v346 = vmul.f32 %v343, %v345
        %v347 = vadd.f32 %v346, -0.16666654
        %v348 = vmul.f32 %v343, %v347
        %v349 = vadd.f32 %v348, 1.0
        %v350 = vmul.f32 %v349, %v334
        %vm351 = vweird.f32 %v207
        %v352 = vadd.s32 %v335, 3
        %v353 = vand.u32 %v352, 3
        %vm354 = vcmp.lt.s32.totalorder %v353, 2
        %vm355 = vcmp.eq.s32.totalorder %v353, 0
        %v356 = vxor.u32 %v350, 2147483648
        %v357 = vsel %vm355, %v342, %v356
        %vm358 = vcmp.eq.s32.totalorder %v353, 2
        %v359 = vxor.u32 %v342, 2147483648
        %v360 = vsel %vm358, %v359, %v350
        %v361 = vsel %vm354, %v357, %v360
        %v362 = vsel %vm351, nan, %v361
        %v363 = vmul.f32 %v185, %v362
        %v364 = vmul.f32 %v205, 150.79645
        %v365 = vand.u32 2147483647, %v364
        %vm366 = vcmp.le.f32.partialorder %v365, 0.7853982
        %vm367 = vcmp.lt.s32.totalorder %v364, 0
        %v368 = vand.u32 %v364, 2139095040
        %v369 = vshrl.u32 %v368, 23
        %v370 = vsub.s32 %v369, 127
        %v371 = vand.u32 2147483647, %v364
        %v372 = vand.u32 %v371, 8388607
        %v373 = vor.u32 %v372, 8388608
        %v374 = vsub.s32 0, %v373
        %v375 = vadd.s32 %v370, 1
        %vm376 = vcmp.gt.s32.totalorder %v375, 0
        %v377 = vsel %vm376, %v375, 0
        %v378 = vshrl.u32 %v377, 5
        %v379 = vand.u32 %v377, 31
        %v380 = vsub.s32 32, %v379
        %v381 = vshrl.u32 683565275, %v380
        %v382 = vshll.u32 683565275, %v379
        %v383 = vshrl.u32 2475754826, %v380
        %v384 = vor.u32 %v382, %v383
        %v385 = vshll.u32 2475754826, %v379
        %v386 = vshrl.u32 2131351028, %v380
        %v387 = vor.u32 %v385, %v386
        %v388 = vshll.u32 2131351028, %v379
        %v389 = vshrl.u32 2102212464, %v380
        %v390 = vor.u32 %v388, %v389
        %v391 = vshll.u32 2102212464, %v379
        %v392 = vshrl.u32 920167782, %v380
        %v393 = vor.u32 %v391, %v392
        %v394 = vshll.u32 920167782, %v379
        %v395 = vshrl.u32 1326507024, %v380
        %v396 = vor.u32 %v394, %v395
        %vm397 = vcmp.lt.s32.totalorder %v378, 1
        %vm398 = vcmp.lt.s32.totalorder %v378, 2
        %vm399 = vcmp.lt.s32.totalorder %v378, 3
        %vm400 = vcmp.lt.s32.totalorder %v378, 4
        %v401 = vsel %vm397, %v381, %v384
        %v402 = vsel %vm400, %v390, 2102212464
        %v403 = vsel %vm399, %v387, %v402
        %v404 = vsel %vm398, %v401, %v403
        %v405 = vsel %vm397, %v384, %v387
        %v406 = vsel %vm400, %v393, 920167782
        %v407 = vsel %vm399, %v390, %v406
        %v408 = vsel %vm398, %v405, %v407
        %v409 = vsel %vm397, %v387, %v390
        %v410 = vsel %vm400, %v396, 1326507024
        %v411 = vsel %vm399, %v393, %v410
        %v412 = vsel %vm398, %v409, %v411
        %v413 = vshll.u32 %v373, 8
        %v414 = vand.u32 %v413, 65535
        %v415 = vshrl.u32 %v413, 16
        %v416 = vand.u32 %v412, 65535
        %v417 = vshrl.u32 %v412, 16
        %v418 = vmul.u32 %v414, %v416
        %v419 = vmul.u32 %v414, %v417
        %v420 = vmul.u32 %v415, %v416
        %v421 = vmul.u32 %v415, %v417
        %v422 = vshll.u32 %v419, 16
        %v423 = vshrl.u32 %v419, 16
        %v424 = vshll.u32 %v420, 16
        %v425 = vshrl.u32 %v420, 16
        %vm426 = vc.u32 %v418, %v422
        %v427 = vsel %vm426, 1, 0
        %v428 = vadd.s32 %v418, %v422
        %v429 = vadd.s32 %v421, %v427
        %vm430 = vc.u32 %v428, %v424
        %v431 = vsel %vm430, 1, 0
        %v432 = vadd.s32 %v428, %v424
        %v433 = vadd.s32 %v429, %v431
        %v434 = vadd.s32 %v433, %v423
        %v435 = vadd.s32 %v434, %v425
        %v436 = vand.u32 %v413, 65535
        %v437 = vshrl.u32 %v413, 16
        %v438 = vand.u32 %v408, 65535
        %v439 = vshrl.u32 %v408, 16
        %v440 = vmul.u32 %v436, %v438
        %v441 = vmul.u32 %v436, %v439
        %v442 = vmul.u32 %v437, %v438
        %v443 = vmul.u32 %v437, %v439
        %v444 = vshll.u32 %v441, 16
        %v445 = vshrl.u32 %v441, 16
        %v446 = vshll.u32 %v442, 16
        %v447 = vshrl.u32 %v442, 16
        %vm448 = vc.u32 %v440, %v444
        %v449 = vsel %vm448, 1, 0
        %v450 = vadd.s32 %v440, %v444
        %v451 = vadd.s32 %v443, %v449
        %vm452 = vc.u32 %v450, %v446
        %v453 = vsel %vm452, 1, 0
        %v454 = vadd.s32 %v450, %v446
        %v455 = vadd.s32 %v451, %v453
        %v456 = vadd.s32 %v455, %v445
        %v457 = vadd.s32 %v456, %v447
        %v458 = vmul.u32 %v413, %v404
        %v459 = vadd.s32 %v435, %v454
        %vm460 = vc.u32 %v435, %v454
        %v461 = vadd.s32 %v457, 1
        %v462 = vsel %vm460, %v461, %v457
        %v463 = vadd.s32 %v458, %v462
        %v464 = vadd.s32 %v463, 536870912
        %v465 = vshrl.u32 %v464, 30
        %v466 = vshll.u32 %v465, 30
        %v467 = vsub.s32 %v463, %v466
        %vm468 = vcmp.lt.s32.totalorder %v467, 0
        %v469 = vsub.s32 0, %v467
        %v470 = vsel %vm468, %v469, %v467
        %v471 = vclz %v470
        %v472 = vsub.s32 %v471, 2
        %vm473 = vcmp.gt.s32.totalorder 0, %v472
        %v474 = vsel %vm473, 0, %v472
        %v475 = vsub.s32 32, %v474
        %v476 = vshll.u32 %v467, %v474
        %v477 = vshrl.u32 %v459, %v475
        %v478 = vor.u32 %v476, %v477
        %v479 = vsub.s32 4294967266, %v474
        %v480 = vadd.s32 %v479, 127
        %v481 = vshll.u32 %v480, 23
        %v482 = vor.u32 4788187, %v481
        %v483 = vand.u32 2147483647, %v482
        %v485 = vcvt.s32.f32 %v478
        %v486 = vmul.f32 %v485, %v483
        %v487 = vxor.u32 %v486, 2147483648
        %v488 = vsel %vm367, %v487, %v486
        %v489 = vsub.s32 4, %v465
        %v490 = vsel %vm367, %v489, %v465
        %v491 = vsel %vm366, %v364, %v488
        %v492 = vsel %vm366, 0, %v490
        %v493 = vmul.f32 %v491, %v491
        %v494 = vmul.f32 %v493, -0.001358992
        %v495 = vadd.f32 %v494, 0.041655596
        %v496 = vmul.f32 %v493, %v495
        %v497 = vadd.f32 %v496, -0.4999988
        %v498 = vmul.f32 %v493, %v497
        %v499 = vadd.f32 1.0, %v498
        %v500 = vmul.f32 %v491, %v491
        %v501 = vmul.f32 %v500, -0.00019511016
        %v502 = vadd.f32 %v501, 0.008332121
        %v503 = vmul.f32 %v500, %v502
        %v504 = vadd.f32 %v503, -0.16666654
        %v505 = vmul.f32 %v500, %v504
        %v506 = vadd.f32 %v505, 1.0
        %v507 = vmul.f32 %v506, %v491
        %vm508 = vweird.f32 %v364
        %v509 = vadd.s32 %v492, 3
        %v510 = vand.u32 %v509, 3
        %vm511 = vcmp.lt.s32.totalorder %v510, 2
        %vm512 = vcmp.eq.s32.totalorder %v510, 0
        %v513 = vxor.u32 %v507, 2147483648
        %v514 = vsel %vm512, %v499, %v513
        %vm515 = vcmp.eq.s32.totalorder %v510, 2
        %v516 = vxor.u32 %v499, 2147483648
        %v517 = vsel %vm515, %v516, %v507
        %v518 = vsel %vm511, %v514, %v517
        %v519 = vsel %vm508, nan, %v518
        %v520 = vmul.f32 %v185, %v519
        %v521 = vand.u32 2147483647, %v207
        %vm522 = vcmp.le.f32.partialorder %v521, 0.7853982
        %vm523 = vcmp.lt.s32.totalorder %v207, 0
        %v524 = vand.u32 %v207, 2139095040
        %v525 = vshrl.u32 %v524, 23
        %v526 = vsub.s32 %v525, 127
        %v527 = vand.u32 2147483647, %v207
        %v528 = vand.u32 %v527, 8388607
        %v529 = vor.u32 %v528, 8388608
        %v530 = vsub.s32 0, %v529
        %v531 = vadd.s32 %v526, 1
        %vm532 = vcmp.gt.s32.totalorder %v531, 0
        %v533 = vsel %vm532, %v531, 0
        %v534 = vshrl.u32 %v533, 5
        %v535 = vand.u32 %v533, 31
        %v536 = vsub.s32 32, %v535
        %v537 = vshrl.u32 683565275, %v536
        %v538 = vshll.u32 683565275, %v535
        %v539 = vshrl.u32 2475754826, %v536
        %v540 = vor.u32 %v538, %v539
        %v541 = vshll.u32 2475754826, %v535
        %v542 = vshrl.u32 2131351028, %v536
        %v543 = vor.u32 %v541, %v542
        %v544 = vshll.u32 2131351028, %v535
        %v545 = vshrl.u32 2102212464, %v536
        %v546 = vor.u32 %v544, %v545
        %v547 = vshll.u32 2102212464, %v535
        %v548 = vshrl.u32 920167782, %v536
        %v549 = vor.u32 %v547, %v548
        %v550 = vshll.u32 920167782, %v535
        %v551 = vshrl.u32 1326507024, %v536
        %v552 = vor.u32 %v550, %v551
        %vm553 = vcmp.lt.s32.totalorder %v534, 1
        %vm554 = vcmp.lt.s32.totalorder %v534, 2
        %vm555 = vcmp.lt.s32.totalorder %v534, 3
        %vm556 = vcmp.lt.s32.totalorder %v534, 4
        %v557 = vsel %vm553, %v537, %v540
        %v558 = vsel %vm556, %v546, 2102212464
        %v559 = vsel %vm555, %v543, %v558
        %v560 = vsel %vm554, %v557, %v559
        %v561 = vsel %vm553, %v540, %v543
        %v562 = vsel %vm556, %v549, 920167782
        %v563 = vsel %vm555, %v546, %v562
        %v564 = vsel %vm554, %v561, %v563
        %v565 = vsel %vm553, %v543, %v546
        %v566 = vsel %vm556, %v552, 1326507024
        %v567 = vsel %vm555, %v549, %v566
        %v568 = vsel %vm554, %v565, %v567
        %v569 = vshll.u32 %v529, 8
        %v570 = vand.u32 %v569, 65535
        %v571 = vshrl.u32 %v569, 16
        %v572 = vand.u32 %v568, 65535
        %v573 = vshrl.u32 %v568, 16
        %v574 = vmul.u32 %v570, %v572
        %v575 = vmul.u32 %v570, %v573
        %v576 = vmul.u32 %v571, %v572
        %v577 = vmul.u32 %v571, %v573
        %v578 = vshll.u32 %v575, 16
        %v579 = vshrl.u32 %v575, 16
        %v580 = vshll.u32 %v576, 16
        %v581 = vshrl.u32 %v576, 16
        %vm582 = vc.u32 %v574, %v578
        %v583 = vsel %vm582, 1, 0
        %v584 = vadd.s32 %v574, %v578
        %v585 = vadd.s32 %v577, %v583
        %vm586 = vc.u32 %v584, %v580
        %v587 = vsel %vm586, 1, 0
        %v588 = vadd.s32 %v584, %v580
        %v589 = vadd.s32 %v585, %v587
        %v590 = vadd.s32 %v589, %v579
        %v591 = vadd.s32 %v590, %v581
        %v592 = vand.u32 %v569, 65535
        %v593 = vshrl.u32 %v569, 16
        %v594 = vand.u32 %v564, 65535
        %v595 = vshrl.u32 %v564, 16
        %v596 = vmul.u32 %v592, %v594
        %v597 = vmul.u32 %v592, %v595
        %v598 = vmul.u32 %v593, %v594
        %v599 = vmul.u32 %v593, %v595
        %v600 = vshll.u32 %v597, 16
        %v601 = vshrl.u32 %v597, 16
        %v602 = vshll.u32 %v598, 16
        %v603 = vshrl.u32 %v598, 16
        %vm604 = vc.u32 %v596, %v600
        %v605 = vsel %vm604, 1, 0
        %v606 = vadd.s32 %v596, %v600
        %v607 = vadd.s32 %v599, %v605
        %vm608 = vc.u32 %v606, %v602
        %v609 = vsel %vm608, 1, 0
        %v610 = vadd.s32 %v606, %v602
        %v611 = vadd.s32 %v607, %v609
        %v612 = vadd.s32 %v611, %v601
        %v613 = vadd.s32 %v612, %v603
        %v614 = vmul.u32 %v569, %v560
        %v615 = vadd.s32 %v591, %v610
        %vm616 = vc.u32 %v591, %v610
        %v617 = vadd.s32 %v613, 1
        %v618 = vsel %vm616, %v617, %v613
        %v619 = vadd.s32 %v614, %v618
        %v620 = vadd.s32 %v619, 536870912
        %v621 = vshrl.u32 %v620, 30
        %v622 = vshll.u32 %v621, 30
        %v623 = vsub.s32 %v619, %v622
        %vm624 = vcmp.lt.s32.totalorder %v623, 0
        %v625 = vsub.s32 0, %v623
        %v626 = vsel %vm624, %v625, %v623
        %v627 = vclz %v626
        %v628 = vsub.s32 %v627, 2
        %vm629 = vcmp.gt.s32.totalorder 0, %v628
        %v630 = vsel %vm629, 0, %v628
        %v631 = vsub.s32 32, %v630
        %v632 = vshll.u32 %v623, %v630
        %v633 = vshrl.u32 %v615, %v631
        %v634 = vor.u32 %v632, %v633
        %v635 = vsub.s32 4294967266, %v630
        %v636 = vadd.s32 %v635, 127
        %v637 = vshll.u32 %v636, 23
        %v638 = vor.u32 4788187, %v637
        %v639 = vand.u32 2147483647, %v638
        %v641 = vcvt.s32.f32 %v634
        %v642 = vmul.f32 %v641, %v639
        %v643 = vxor.u32 %v642, 2147483648
        %v644 = vsel %vm523, %v643, %v642
        %v645 = vsub.s32 4, %v621
        %v646 = vsel %vm523, %v645, %v621
        %v647 = vsel %vm522, %v207, %v644
        %v648 = vsel %vm522, 0, %v646
        %v649 = vmul.f32 %v647, %v647
        %v650 = vmul.f32 %v649, -0.001358992
        %v651 = vadd.f32 %v650, 0.041655596
        %v652 = vmul.f32 %v649, %v651
        %v653 = vadd.f32 %v652, -0.4999988
        %v654 = vmul.f32 %v649, %v653
        %v655 = vadd.f32 1.0, %v654
        %v656 = vmul.f32 %v647, %v647
        %v657 = vmul.f32 %v656, -0.00019511016
        %v658 = vadd.f32 %v657, 0.008332121
        %v659 = vmul.f32 %v656, %v658
        %v660 = vadd.f32 %v659, -0.16666654
        %v661 = vmul.f32 %v656, %v660
        %v662 = vadd.f32 %v661, 1.0
        %v663 = vmul.f32 %v662, %v647
        %vm664 = vweird.f32 %v207
        %v665 = vand.u32 %v648, 3
        %vm666 = vcmp.lt.s32.totalorder %v665, 2
        %vm667 = vcmp.eq.s32.totalorder %v665, 0
        %v668 = vxor.u32 %v663, 2147483648
        %v669 = vsel %vm667, %v655, %v668
        %vm670 = vcmp.eq.s32.totalorder %v665, 2
        %v671 = vxor.u32 %v655, 2147483648
        %v672 = vsel %vm670, %v671, %v663
        %v673 = vsel %vm666, %v669, %v672
        %v674 = vsel %vm664, nan, %v673
        %v675 = vmul.f32 %v185, %v674
        %v676 = vand.u32 2147483647, %v364
        %vm677 = vcmp.le.f32.partialorder %v676, 0.7853982
        %vm678 = vcmp.lt.s32.totalorder %v364, 0
        %v679 = vand.u32 %v364, 2139095040
        %v680 = vshrl.u32 %v679, 23
        %v681 = vsub.s32 %v680, 127
        %v682 = vand.u32 2147483647, %v364
        %v683 = vand.u32 %v682, 8388607
        %v684 = vor.u32 %v683, 8388608
        %v685 = vsub.s32 0, %v684
        %v686 = vadd.s32 %v681, 1
        %vm687 = vcmp.gt.s32.totalorder %v686, 0
        %v688 = vsel %vm687, %v686, 0
        %v689 = vshrl.u32 %v688, 5
        %v690 = vand.u32 %v688, 31
        %v691 = vsub.s32 32, %v690
        %v692 = vshrl.u32 683565275, %v691
        %v693 = vshll.u32 683565275, %v690
        %v694 = vshrl.u32 2475754826, %v691
        %v695 = vor.u32 %v693, %v694
        %v696 = vshll.u32 2475754826, %v690
        %v697 = vshrl.u32 2131351028, %v691
        %v698 = vor.u32 %v696, %v697
        %v699 = vshll.u32 2131351028, %v690
        %v700 = vshrl.u32 2102212464, %v691
        %v701 = vor.u32 %v699, %v700
        %v702 = vshll.u32 2102212464, %v690
        %v703 = vshrl.u32 920167782, %v691
        %v704 = vor.u32 %v702, %v703
        %v705 = vshll.u32 920167782, %v690
        %v706 = vshrl.u32 1326507024, %v691
        %v707 = vor.u32 %v705, %v706
        %vm708 = vcmp.lt.s32.totalorder %v689, 1
        %vm709 = vcmp.lt.s32.totalorder %v689, 2
        %vm710 = vcmp.lt.s32.totalorder %v689, 3
        %vm711 = vcmp.lt.s32.totalorder %v689, 4
        %v712 = vsel %vm708, %v692, %v695
        %v713 = vsel %vm711, %v701, 2102212464
        %v714 = vsel %vm710, %v698, %v713
        %v715 = vsel %vm709, %v712, %v714
        %v716 = vsel %vm708, %v695, %v698
        %v717 = vsel %vm711, %v704, 920167782
        %v718 = vsel %vm710, %v701, %v717
        %v719 = vsel %vm709, %v716, %v718
        %v720 = vsel %vm708, %v698, %v701
        %v721 = vsel %vm711, %v707, 1326507024
        %v722 = vsel %vm710, %v704, %v721
        %v723 = vsel %vm709, %v720, %v722
        %v724 = vshll.u32 %v684, 8
        %v725 = vand.u32 %v724, 65535
        %v726 = vshrl.u32 %v724, 16
        %v727 = vand.u32 %v723, 65535
        %v728 = vshrl.u32 %v723, 16
        %v729 = vmul.u32 %v725, %v727
        %v730 = vmul.u32 %v725, %v728
        %v731 = vmul.u32 %v726, %v727
        %v732 = vmul.u32 %v726, %v728
        %v733 = vshll.u32 %v730, 16
        %v734 = vshrl.u32 %v730, 16
        %v735 = vshll.u32 %v731, 16
        %v736 = vshrl.u32 %v731, 16
        %vm737 = vc.u32 %v729, %v733
        %v738 = vsel %vm737, 1, 0
        %v739 = vadd.s32 %v729, %v733
        %v740 = vadd.s32 %v732, %v738
        %vm741 = vc.u32 %v739, %v735
        %v742 = vsel %vm741, 1, 0
        %v743 = vadd.s32 %v739, %v735
        %v744 = vadd.s32 %v740, %v742
        %v745 = vadd.s32 %v744, %v734
        %v746 = vadd.s32 %v745, %v736
        %v747 = vand.u32 %v724, 65535
        %v748 = vshrl.u32 %v724, 16
        %v749 = vand.u32 %v719, 65535
        %v750 = vshrl.u32 %v719, 16
        %v751 = vmul.u32 %v747, %v749
        %v752 = vmul.u32 %v747, %v750
        %v753 = vmul.u32 %v748, %v749
        %v754 = vmul.u32 %v748, %v750
        %v755 = vshll.u32 %v752, 16
        %v756 = vshrl.u32 %v752, 16
        %v757 = vshll.u32 %v753, 16
        %v758 = vshrl.u32 %v753, 16
        %vm759 = vc.u32 %v751, %v755
        %v760 = vsel %vm759, 1, 0
        %v761 = vadd.s32 %v751, %v755
        %v762 = vadd.s32 %v754, %v760
        %vm763 = vc.u32 %v761, %v757
        %v764 = vsel %vm763, 1, 0
        %v765 = vadd.s32 %v761, %v757
        %v766 = vadd.s32 %v762, %v764
        %v767 = vadd.s32 %v766, %v756
        %v768 = vadd.s32 %v767, %v758
        %v769 = vmul.u32 %v724, %v715
        %v770 = vadd.s32 %v746, %v765
        %vm771 = vc.u32 %v746, %v765
        %v772 = vadd.s32 %v768, 1
        %v773 = vsel %vm771, %v772, %v768
        %v774 = vadd.s32 %v769, %v773
        %v775 = vadd.s32 %v774, 536870912
        %v776 = vshrl.u32 %v775, 30
        %v777 = vshll.u32 %v776, 30
        %v778 = vsub.s32 %v774, %v777
        %vm779 = vcmp.lt.s32.totalorder %v778, 0
        %v780 = vsub.s32 0, %v778
        %v781 = vsel %vm779, %v780, %v778
        %v782 = vclz %v781
        %v783 = vsub.s32 %v782, 2
        %vm784 = vcmp.gt.s32.totalorder 0, %v783
        %v785 = vsel %vm784, 0, %v783
        %v786 = vsub.s32 32, %v785
        %v787 = vshll.u32 %v778, %v785
        %v788 = vshrl.u32 %v770, %v786
        %v789 = vor.u32 %v787, %v788
        %v790 = vsub.s32 4294967266, %v785
        %v791 = vadd.s32 %v790, 127
        %v792 = vshll.u32 %v791, 23
        %v793 = vor.u32 4788187, %v792
        %v794 = vand.u32 2147483647, %v793
        %v796 = vcvt.s32.f32 %v789
        %v797 = vmul.f32 %v796, %v794
        %v798 = vxor.u32 %v797, 2147483648
        %v799 = vsel %vm678, %v798, %v797
        %v800 = vsub.s32 4, %v776
        %v801 = vsel %vm678, %v800, %v776
        %v802 = vsel %vm677, %v364, %v799
        %v803 = vsel %vm677, 0, %v801
        %v804 = vmul.f32 %v802, %v802
        %v805 = vmul.f32 %v804, -0.001358992
        %v806 = vadd.f32 %v805, 0.041655596
        %v807 = vmul.f32 %v804, %v806
        %v808 = vadd.f32 %v807, -0.4999988
        %v809 = vmul.f32 %v804, %v808
        %v810 = vadd.f32 1.0, %v809
        %v811 = vmul.f32 %v802, %v802
        %v812 = vmul.f32 %v811, -0.00019511016
        %v813 = vadd.f32 %v812, 0.008332121
        %v814 = vmul.f32 %v811, %v813
        %v815 = vadd.f32 %v814, -0.16666654
        %v816 = vmul.f32 %v811, %v815
        %v817 = vadd.f32 %v816, 1.0
        %v818 = vmul.f32 %v817, %v802
        %vm819 = vweird.f32 %v364
        %v820 = vand.u32 %v803, 3
        %vm821 = vcmp.lt.s32.totalorder %v820, 2
        %vm822 = vcmp.eq.s32.totalorder %v820, 0
        %v823 = vxor.u32 %v818, 2147483648
        %v824 = vsel %vm822, %v810, %v823
        %vm825 = vcmp.eq.s32.totalorder %v820, 2
        %v826 = vxor.u32 %v810, 2147483648
        %v827 = vsel %vm825, %v826, %v818
        %v828 = vsel %vm821, %v824, %v827
        %v829 = vsel %vm819, nan, %v828
        %v830 = vmul.f32 %v185, %v829
        %v831 = vperm.slane %v206, 0
        %v832 = vlaneseq
        %v833 = vshrl.u32 %v832, 7
        %835 = vset.pattern.permute.xlu0 %v833
        %836 = vperm.xlu0 %835, %v831
        %v837 = vpop.permute.xlu0 %836
        %v838 = vlaneseq
        %v839 = vshrl.u32 %v838, 7
        %v840 = vadd.s32 %v839, 8
        %841 = vset.pattern.permute.xlu0 %v840
        %842 = vperm.xlu0 %841, %v831
        %v843 = vpop.permute.xlu0 %842
        %v844 = vperm.slane %v206, 1
        %v845 = vlaneseq
        %v846 = vshrl.u32 %v845, 7
        %848 = vset.pattern.permute.xlu0 %v846
        %849 = vperm.xlu0 %848, %v844
        %v850 = vpop.permute.xlu0 %849
        %v851 = vlaneseq
        %v852 = vshrl.u32 %v851, 7
        %v853 = vadd.s32 %v852, 8
        %854 = vset.pattern.permute.xlu0 %v853
        %855 = vperm.xlu0 %854, %v844
        %v856 = vpop.permute.xlu0 %855
        %v857 = vperm.slane %v206, 2
        %v858 = vlaneseq
        %v859 = vshrl.u32 %v858, 7
        %861 = vset.pattern.permute.xlu0 %v859
        %862 = vperm.xlu0 %861, %v857
        %v863 = vpop.permute.xlu0 %862
        %v864 = vlaneseq
        %v865 = vshrl.u32 %v864, 7
        %v866 = vadd.s32 %v865, 8
        %867 = vset.pattern.permute.xlu0 %v866
        %868 = vperm.xlu0 %867, %v857
        %v869 = vpop.permute.xlu0 %868
        %v870 = vperm.slane %v206, 3
        %v871 = vlaneseq
        %v872 = vshrl.u32 %v871, 7
        %874 = vset.pattern.permute.xlu0 %v872
        %875 = vperm.xlu0 %874, %v870
        %v876 = vpop.permute.xlu0 %875
        %v877 = vlaneseq
        %v878 = vshrl.u32 %v877, 7
        %v879 = vadd.s32 %v878, 8
        %880 = vset.pattern.permute.xlu0 %v879
        %881 = vperm.xlu0 %880, %v870
        %v882 = vpop.permute.xlu0 %881
        %v883 = vperm.slane %v206, 4
        %v884 = vlaneseq
        %v885 = vshrl.u32 %v884, 7
        %887 = vset.pattern.permute.xlu0 %v885
        %888 = vperm.xlu0 %887, %v883
        %v889 = vpop.permute.xlu0 %888
        %v890 = vlaneseq
        %v891 = vshrl.u32 %v890, 7
        %v892 = vadd.s32 %v891, 8
        %893 = vset.pattern.permute.xlu0 %v892
        %894 = vperm.xlu0 %893, %v883
        %v895 = vpop.permute.xlu0 %894
        %v896 = vperm.slane %v206, 5
        %v897 = vlaneseq
        %v898 = vshrl.u32 %v897, 7
        %900 = vset.pattern.permute.xlu0 %v898
        %901 = vperm.xlu0 %900, %v896
        %v902 = vpop.permute.xlu0 %901
        %v903 = vlaneseq
        %v904 = vshrl.u32 %v903, 7
        %v905 = vadd.s32 %v904, 8
        %906 = vset.pattern.permute.xlu0 %v905
        %907 = vperm.xlu0 %906, %v896
        %v908 = vpop.permute.xlu0 %907
        %v909 = vperm.slane %v206, 6
        %v910 = vlaneseq
        %v911 = vshrl.u32 %v910, 7
        %913 = vset.pattern.permute.xlu0 %v911
        %914 = vperm.xlu0 %913, %v909
        %v915 = vpop.permute.xlu0 %914
        %v916 = vlaneseq
        %v917 = vshrl.u32 %v916, 7
        %v918 = vadd.s32 %v917, 8
        %919 = vset.pattern.permute.xlu0 %v918
        %920 = vperm.xlu0 %919, %v909
        %v921 = vpop.permute.xlu0 %920
        %v922 = vperm.slane %v206, 7
        %v923 = vlaneseq
        %v924 = vshrl.u32 %v923, 7
        %926 = vset.pattern.permute.xlu0 %v924
        %927 = vperm.xlu0 %926, %v922
        %v928 = vpop.permute.xlu0 %927
        %v929 = vlaneseq
        %v930 = vshrl.u32 %v929, 7
        %v931 = vadd.s32 %v930, 8
        %932 = vset.pattern.permute.xlu0 %v931
        %933 = vperm.xlu0 %932, %v922
        %v934 = vpop.permute.xlu0 %933
        %v935 = vperm.slane %v185, 0
        %v936 = vlaneseq
        %v937 = vshrl.u32 %v936, 7
        %939 = vset.pattern.permute.xlu0 %v937
        %940 = vperm.xlu0 %939, %v935
        %v941 = vpop.permute.xlu0 %940
        %v942 = vlaneseq
        %v943 = vshrl.u32 %v942, 7
        %v944 = vadd.s32 %v943, 8
        %945 = vset.pattern.permute.xlu0 %v944
        %946 = vperm.xlu0 %945, %v935
        %v947 = vpop.permute.xlu0 %946
        %v948 = vperm.slane %v185, 1
        %v949 = vlaneseq
        %v950 = vshrl.u32 %v949, 7
        %952 = vset.pattern.permute.xlu0 %v950
        %953 = vperm.xlu0 %952, %v948
        %v954 = vpop.permute.xlu0 %953
        %v955 = vlaneseq
        %v956 = vshrl.u32 %v955, 7
        %v957 = vadd.s32 %v956, 8
        %958 = vset.pattern.permute.xlu0 %v957
        %959 = vperm.xlu0 %958, %v948
        %v960 = vpop.permute.xlu0 %959
        %v961 = vperm.slane %v185, 2
        %v962 = vlaneseq
        %v963 = vshrl.u32 %v962, 7
        %965 = vset.pattern.permute.xlu0 %v963
        %966 = vperm.xlu0 %965, %v961
        %v967 = vpop.permute.xlu0 %966
        %v968 = vlaneseq
        %v969 = vshrl.u32 %v968, 7
        %v970 = vadd.s32 %v969, 8
        %971 = vset.pattern.permute.xlu0 %v970
        %972 = vperm.xlu0 %971, %v961
        %v973 = vpop.permute.xlu0 %972
        %v974 = vperm.slane %v185, 3
        %v975 = vlaneseq
        %v976 = vshrl.u32 %v975, 7
        %978 = vset.pattern.permute.xlu0 %v976
        %979 = vperm.xlu0 %978, %v974
        %v980 = vpop.permute.xlu0 %979
        %v981 = vlaneseq
        %v982 = vshrl.u32 %v981, 7
        %v983 = vadd.s32 %v982, 8
        %984 = vset.pattern.permute.xlu0 %v983
        %985 = vperm.xlu0 %984, %v974
        %v986 = vpop.permute.xlu0 %985
        %v987 = vperm.slane %v185, 4
        %v988 = vlaneseq
        %v989 = vshrl.u32 %v988, 7
        %991 = vset.pattern.permute.xlu0 %v989
        %992 = vperm.xlu0 %991, %v987
        %v993 = vpop.permute.xlu0 %992
        %v994 = vlaneseq
        %v995 = vshrl.u32 %v994, 7
        %v996 = vadd.s32 %v995, 8
        %997 = vset.pattern.permute.xlu0 %v996
        %998 = vperm.xlu0 %997, %v987
        %v999 = vpop.permute.xlu0 %998
        %v1000 = vperm.slane %v185, 5
        %v1001 = vlaneseq
        %v1002 = vshrl.u32 %v1001, 7
        %1004 = vset.pattern.permute.xlu0 %v1002
        %1005 = vperm.xlu0 %1004, %v1000
        %v1006 = vpop.permute.xlu0 %1005
        %v1007 = vlaneseq
        %v1008 = vshrl.u32 %v1007, 7
        %v1009 = vadd.s32 %v1008, 8
        %1010 = vset.pattern.permute.xlu0 %v1009
        %1011 = vperm.xlu0 %1010, %v1000
        %v1012 = vpop.permute.xlu0 %1011
        %v1013 = vperm.slane %v185, 6
        %v1014 = vlaneseq
        %v1015 = vshrl.u32 %v1014, 7
        %1017 = vset.pattern.permute.xlu0 %v1015
        %1018 = vperm.xlu0 %1017, %v1013
        %v1019 = vpop.permute.xlu0 %1018
        %v1020 = vlaneseq
        %v1021 = vshrl.u32 %v1020, 7
        %v1022 = vadd.s32 %v1021, 8
        %1023 = vset.pattern.permute.xlu0 %v1022
        %1024 = vperm.xlu0 %1023, %v1013
        %v1025 = vpop.permute.xlu0 %1024
        %v1026 = vperm.slane %v185, 7
        %v1027 = vlaneseq
        %v1028 = vshrl.u32 %v1027, 7
        %1030 = vset.pattern.permute.xlu0 %v1028
        %1031 = vperm.xlu0 %1030, %v1026
        %v1032 = vpop.permute.xlu0 %1031
        %v1033 = vlaneseq
        %v1034 = vshrl.u32 %v1033, 7
        %v1035 = vadd.s32 %v1034, 8
        %1036 = vset.pattern.permute.xlu0 %v1035
        %1037 = vperm.xlu0 %1036, %v1026
        %v1038 = vpop.permute.xlu0 %1037
        %v1039 = vperm.slane %v363, 0
        %v1040 = vlaneseq
        %v1041 = vshrl.u32 %v1040, 7
        %1043 = vset.pattern.permute.xlu0 %v1041
        %1044 = vperm.xlu0 %1043, %v1039
        %v1045 = vpop.permute.xlu0 %1044
        %v1046 = vlaneseq
        %v1047 = vshrl.u32 %v1046, 7
        %v1048 = vadd.s32 %v1047, 8
        %1049 = vset.pattern.permute.xlu0 %v1048
        %1050 = vperm.xlu0 %1049, %v1039
        %v1051 = vpop.permute.xlu0 %1050
        %v1052 = vperm.slane %v363, 1
        %v1053 = vlaneseq
        %v1054 = vshrl.u32 %v1053, 7
        %1056 = vset.pattern.permute.xlu0 %v1054
        %1057 = vperm.xlu0 %1056, %v1052
        %v1058 = vpop.permute.xlu0 %1057
        %v1059 = vlaneseq
        %v1060 = vshrl.u32 %v1059, 7
        %v1061 = vadd.s32 %v1060, 8
        %1062 = vset.pattern.permute.xlu0 %v1061
        %1063 = vperm.xlu0 %1062, %v1052
        %v1064 = vpop.permute.xlu0 %1063
        %v1065 = vperm.slane %v363, 2
        %v1066 = vlaneseq
        %v1067 = vshrl.u32 %v1066, 7
        %1069 = vset.pattern.permute.xlu0 %v1067
        %1070 = vperm.xlu0 %1069, %v1065
        %v1071 = vpop.permute.xlu0 %1070
        %v1072 = vlaneseq
        %v1073 = vshrl.u32 %v1072, 7
        %v1074 = vadd.s32 %v1073, 8
        %1075 = vset.pattern.permute.xlu0 %v1074
        %1076 = vperm.xlu0 %1075, %v1065
        %v1077 = vpop.permute.xlu0 %1076
        %v1078 = vperm.slane %v363, 3
        %v1079 = vlaneseq
        %v1080 = vshrl.u32 %v1079, 7
        %1082 = vset.pattern.permute.xlu0 %v1080
        %1083 = vperm.xlu0 %1082, %v1078
        %v1084 = vpop.permute.xlu0 %1083
        %v1085 = vlaneseq
        %v1086 = vshrl.u32 %v1085, 7
        %v1087 = vadd.s32 %v1086, 8
        %1088 = vset.pattern.permute.xlu0 %v1087
        %1089 = vperm.xlu0 %1088, %v1078
        %v1090 = vpop.permute.xlu0 %1089
        %v1091 = vperm.slane %v363, 4
        %v1092 = vlaneseq
        %v1093 = vshrl.u32 %v1092, 7
        %1095 = vset.pattern.permute.xlu0 %v1093
        %1096 = vperm.xlu0 %1095, %v1091
        %v1097 = vpop.permute.xlu0 %1096
        %v1098 = vlaneseq
        %v1099 = vshrl.u32 %v1098, 7
        %v1100 = vadd.s32 %v1099, 8
        %1101 = vset.pattern.permute.xlu0 %v1100
        %1102 = vperm.xlu0 %1101, %v1091
        %v1103 = vpop.permute.xlu0 %1102
        %v1104 = vperm.slane %v363, 5
        %v1105 = vlaneseq
        %v1106 = vshrl.u32 %v1105, 7
        %1108 = vset.pattern.permute.xlu0 %v1106
        %1109 = vperm.xlu0 %1108, %v1104
        %v1110 = vpop.permute.xlu0 %1109
        %v1111 = vlaneseq
        %v1112 = vshrl.u32 %v1111, 7
        %v1113 = vadd.s32 %v1112, 8
        %1114 = vset.pattern.permute.xlu0 %v1113
        %1115 = vperm.xlu0 %1114, %v1104
        %v1116 = vpop.permute.xlu0 %1115
        %v1117 = vperm.slane %v363, 6
        %v1118 = vlaneseq
        %v1119 = vshrl.u32 %v1118, 7
        %1121 = vset.pattern.permute.xlu0 %v1119
        %1122 = vperm.xlu0 %1121, %v1117
        %v1123 = vpop.permute.xlu0 %1122
        %v1124 = vlaneseq
        %v1125 = vshrl.u32 %v1124, 7
        %v1126 = vadd.s32 %v1125, 8
        %1127 = vset.pattern.permute.xlu0 %v1126
        %1128 = vperm.xlu0 %1127, %v1117
        %v1129 = vpop.permute.xlu0 %1128
        %v1130 = vperm.slane %v363, 7
        %v1131 = vlaneseq
        %v1132 = vshrl.u32 %v1131, 7
        %1134 = vset.pattern.permute.xlu0 %v1132
        %1135 = vperm.xlu0 %1134, %v1130
        %v1136 = vpop.permute.xlu0 %1135
        %v1137 = vlaneseq
        %v1138 = vshrl.u32 %v1137, 7
        %v1139 = vadd.s32 %v1138, 8
        %1140 = vset.pattern.permute.xlu0 %v1139
        %1141 = vperm.xlu0 %1140, %v1130
        %v1142 = vpop.permute.xlu0 %1141
        %v1143 = vperm.slane %v520, 0
        %v1144 = vlaneseq
        %v1145 = vshrl.u32 %v1144, 7
        %1147 = vset.pattern.permute.xlu0 %v1145
        %1148 = vperm.xlu0 %1147, %v1143
        %v1149 = vpop.permute.xlu0 %1148
        %v1150 = vlaneseq
        %v1151 = vshrl.u32 %v1150, 7
        %v1152 = vadd.s32 %v1151, 8
        %1153 = vset.pattern.permute.xlu0 %v1152
        %1154 = vperm.xlu0 %1153, %v1143
        %v1155 = vpop.permute.xlu0 %1154
        %v1156 = vperm.slane %v520, 1
        %v1157 = vlaneseq
        %v1158 = vshrl.u32 %v1157, 7
        %1160 = vset.pattern.permute.xlu0 %v1158
        %1161 = vperm.xlu0 %1160, %v1156
        %v1162 = vpop.permute.xlu0 %1161
        %v1163 = vlaneseq
        %v1164 = vshrl.u32 %v1163, 7
        %v1165 = vadd.s32 %v1164, 8
        %1166 = vset.pattern.permute.xlu0 %v1165
        %1167 = vperm.xlu0 %1166, %v1156
        %v1168 = vpop.permute.xlu0 %1167
        %v1169 = vperm.slane %v520, 2
        %v1170 = vlaneseq
        %v1171 = vshrl.u32 %v1170, 7
        %1173 = vset.pattern.permute.xlu0 %v1171
        %1174 = vperm.xlu0 %1173, %v1169
        %v1175 = vpop.permute.xlu0 %1174
        %v1176 = vlaneseq
        %v1177 = vshrl.u32 %v1176, 7
        %v1178 = vadd.s32 %v1177, 8
        %1179 = vset.pattern.permute.xlu0 %v1178
        %1180 = vperm.xlu0 %1179, %v1169
        %v1181 = vpop.permute.xlu0 %1180
        %v1182 = vperm.slane %v520, 3
        %v1183 = vlaneseq
        %v1184 = vshrl.u32 %v1183, 7
        %1186 = vset.pattern.permute.xlu0 %v1184
        %1187 = vperm.xlu0 %1186, %v1182
        %v1188 = vpop.permute.xlu0 %1187
        %v1189 = vlaneseq
        %v1190 = vshrl.u32 %v1189, 7
        %v1191 = vadd.s32 %v1190, 8
        %1192 = vset.pattern.permute.xlu0 %v1191
        %1193 = vperm.xlu0 %1192, %v1182
        %v1194 = vpop.permute.xlu0 %1193
        %v1195 = vperm.slane %v520, 4
        %v1196 = vlaneseq
        %v1197 = vshrl.u32 %v1196, 7
        %1199 = vset.pattern.permute.xlu0 %v1197
        %1200 = vperm.xlu0 %1199, %v1195
        %v1201 = vpop.permute.xlu0 %1200
        %v1202 = vlaneseq
        %v1203 = vshrl.u32 %v1202, 7
        %v1204 = vadd.s32 %v1203, 8
        %1205 = vset.pattern.permute.xlu0 %v1204
        %1206 = vperm.xlu0 %1205, %v1195
        %v1207 = vpop.permute.xlu0 %1206
        %v1208 = vperm.slane %v520, 5
        %v1209 = vlaneseq
        %v1210 = vshrl.u32 %v1209, 7
        %1212 = vset.pattern.permute.xlu0 %v1210
        %1213 = vperm.xlu0 %1212, %v1208
        %v1214 = vpop.permute.xlu0 %1213
        %v1215 = vlaneseq
        %v1216 = vshrl.u32 %v1215, 7
        %v1217 = vadd.s32 %v1216, 8
        %1218 = vset.pattern.permute.xlu0 %v1217
        %1219 = vperm.xlu0 %1218, %v1208
        %v1220 = vpop.permute.xlu0 %1219
        %v1221 = vperm.slane %v520, 6
        %v1222 = vlaneseq
        %v1223 = vshrl.u32 %v1222, 7
        %1225 = vset.pattern.permute.xlu0 %v1223
        %1226 = vperm.xlu0 %1225, %v1221
        %v1227 = vpop.permute.xlu0 %1226
        %v1228 = vlaneseq
        %v1229 = vshrl.u32 %v1228, 7
        %v1230 = vadd.s32 %v1229, 8
        %1231 = vset.pattern.permute.xlu0 %v1230
        %1232 = vperm.xlu0 %1231, %v1221
        %v1233 = vpop.permute.xlu0 %1232
        %v1234 = vperm.slane %v520, 7
        %v1235 = vlaneseq
        %v1236 = vshrl.u32 %v1235, 7
        %1238 = vset.pattern.permute.xlu0 %v1236
        %1239 = vperm.xlu0 %1238, %v1234
        %v1240 = vpop.permute.xlu0 %1239
        %v1241 = vlaneseq
        %v1242 = vshrl.u32 %v1241, 7
        %v1243 = vadd.s32 %v1242, 8
        %1244 = vset.pattern.permute.xlu0 %v1243
        %1245 = vperm.xlu0 %1244, %v1234
        %v1246 = vpop.permute.xlu0 %1245
        %v1247 = vperm.slane %v675, 0
        %v1248 = vlaneseq
        %v1249 = vshrl.u32 %v1248, 7
        %1251 = vset.pattern.permute.xlu0 %v1249
        %1252 = vperm.xlu0 %1251, %v1247
        %v1253 = vpop.permute.xlu0 %1252
        %v1254 = vlaneseq
        %v1255 = vshrl.u32 %v1254, 7
        %v1256 = vadd.s32 %v1255, 8
        %1257 = vset.pattern.permute.xlu0 %v1256
        %1258 = vperm.xlu0 %1257, %v1247
        %v1259 = vpop.permute.xlu0 %1258
        %v1260 = vperm.slane %v675, 1
        %v1261 = vlaneseq
        %v1262 = vshrl.u32 %v1261, 7
        %1264 = vset.pattern.permute.xlu0 %v1262
        %1265 = vperm.xlu0 %1264, %v1260
        %v1266 = vpop.permute.xlu0 %1265
        %v1267 = vlaneseq
        %v1268 = vshrl.u32 %v1267, 7
        %v1269 = vadd.s32 %v1268, 8
        %1270 = vset.pattern.permute.xlu0 %v1269
        %1271 = vperm.xlu0 %1270, %v1260
        %v1272 = vpop.permute.xlu0 %1271
        %v1273 = vperm.slane %v675, 2
        %v1274 = vlaneseq
        %v1275 = vshrl.u32 %v1274, 7
        %1277 = vset.pattern.permute.xlu0 %v1275
        %1278 = vperm.xlu0 %1277, %v1273
        %v1279 = vpop.permute.xlu0 %1278
        %v1280 = vlaneseq
        %v1281 = vshrl.u32 %v1280, 7
        %v1282 = vadd.s32 %v1281, 8
        %1283 = vset.pattern.permute.xlu0 %v1282
        %1284 = vperm.xlu0 %1283, %v1273
        %v1285 = vpop.permute.xlu0 %1284
        %v1286 = vperm.slane %v675, 3
        %v1287 = vlaneseq
        %v1288 = vshrl.u32 %v1287, 7
        %1290 = vset.pattern.permute.xlu0 %v1288
        %1291 = vperm.xlu0 %1290, %v1286
        %v1292 = vpop.permute.xlu0 %1291
        %v1293 = vlaneseq
        %v1294 = vshrl.u32 %v1293, 7
        %v1295 = vadd.s32 %v1294, 8
        %1296 = vset.pattern.permute.xlu0 %v1295
        %1297 = vperm.xlu0 %1296, %v1286
        %v1298 = vpop.permute.xlu0 %1297
        %v1299 = vperm.slane %v675, 4
        %v1300 = vlaneseq
        %v1301 = vshrl.u32 %v1300, 7
        %1303 = vset.pattern.permute.xlu0 %v1301
        %1304 = vperm.xlu0 %1303, %v1299
        %v1305 = vpop.permute.xlu0 %1304
        %v1306 = vlaneseq
        %v1307 = vshrl.u32 %v1306, 7
        %v1308 = vadd.s32 %v1307, 8
        %1309 = vset.pattern.permute.xlu0 %v1308
        %1310 = vperm.xlu0 %1309, %v1299
        %v1311 = vpop.permute.xlu0 %1310
        %v1312 = vperm.slane %v675, 5
        %v1313 = vlaneseq
        %v1314 = vshrl.u32 %v1313, 7
        %1316 = vset.pattern.permute.xlu0 %v1314
        %1317 = vperm.xlu0 %1316, %v1312
        %v1318 = vpop.permute.xlu0 %1317
        %v1319 = vlaneseq
        %v1320 = vshrl.u32 %v1319, 7
        %v1321 = vadd.s32 %v1320, 8
        %1322 = vset.pattern.permute.xlu0 %v1321
        %1323 = vperm.xlu0 %1322, %v1312
        %v1324 = vpop.permute.xlu0 %1323
        %v1325 = vperm.slane %v675, 6
        %v1326 = vlaneseq
        %v1327 = vshrl.u32 %v1326, 7
        %1329 = vset.pattern.permute.xlu0 %v1327
        %1330 = vperm.xlu0 %1329, %v1325
        %v1331 = vpop.permute.xlu0 %1330
        %v1332 = vlaneseq
        %v1333 = vshrl.u32 %v1332, 7
        %v1334 = vadd.s32 %v1333, 8
        %1335 = vset.pattern.permute.xlu0 %v1334
        %1336 = vperm.xlu0 %1335, %v1325
        %v1337 = vpop.permute.xlu0 %1336
        %v1338 = vperm.slane %v675, 7
        %v1339 = vlaneseq
        %v1340 = vshrl.u32 %v1339, 7
        %1342 = vset.pattern.permute.xlu0 %v1340
        %1343 = vperm.xlu0 %1342, %v1338
        %v1344 = vpop.permute.xlu0 %1343
        %v1345 = vlaneseq
        %v1346 = vshrl.u32 %v1345, 7
        %v1347 = vadd.s32 %v1346, 8
        %1348 = vset.pattern.permute.xlu0 %v1347
        %1349 = vperm.xlu0 %1348, %v1338
        %v1350 = vpop.permute.xlu0 %1349
        %v1351 = vperm.slane %v830, 0
        %v1352 = vlaneseq
        %v1353 = vshrl.u32 %v1352, 7
        %1355 = vset.pattern.permute.xlu0 %v1353
        %1356 = vperm.xlu0 %1355, %v1351
        %v1357 = vpop.permute.xlu0 %1356
        %v1358 = vlaneseq
        %v1359 = vshrl.u32 %v1358, 7
        %v1360 = vadd.s32 %v1359, 8
        %1361 = vset.pattern.permute.xlu0 %v1360
        %1362 = vperm.xlu0 %1361, %v1351
        %v1363 = vpop.permute.xlu0 %1362
        %v1364 = vperm.slane %v830, 1
        %v1365 = vlaneseq
        %v1366 = vshrl.u32 %v1365, 7
        %1368 = vset.pattern.permute.xlu0 %v1366
        %1369 = vperm.xlu0 %1368, %v1364
        %v1370 = vpop.permute.xlu0 %1369
        %v1371 = vlaneseq
        %v1372 = vshrl.u32 %v1371, 7
        %v1373 = vadd.s32 %v1372, 8
        %1374 = vset.pattern.permute.xlu0 %v1373
        %1375 = vperm.xlu0 %1374, %v1364
        %v1376 = vpop.permute.xlu0 %1375
        %v1377 = vperm.slane %v830, 2
        %v1378 = vlaneseq
        %v1379 = vshrl.u32 %v1378, 7
        %1381 = vset.pattern.permute.xlu0 %v1379
        %1382 = vperm.xlu0 %1381, %v1377
        %v1383 = vpop.permute.xlu0 %1382
        %v1384 = vlaneseq
        %v1385 = vshrl.u32 %v1384, 7
        %v1386 = vadd.s32 %v1385, 8
        %1387 = vset.pattern.permute.xlu0 %v1386
        %1388 = vperm.xlu0 %1387, %v1377
        %v1389 = vpop.permute.xlu0 %1388
        %v1390 = vperm.slane %v830, 3
        %v1391 = vlaneseq
        %v1392 = vshrl.u32 %v1391, 7
        %1394 = vset.pattern.permute.xlu0 %v1392
        %1395 = vperm.xlu0 %1394, %v1390
        %v1396 = vpop.permute.xlu0 %1395
        %v1397 = vlaneseq
        %v1398 = vshrl.u32 %v1397, 7
        %v1399 = vadd.s32 %v1398, 8
        %1400 = vset.pattern.permute.xlu0 %v1399
        %1401 = vperm.xlu0 %1400, %v1390
        %v1402 = vpop.permute.xlu0 %1401
        %v1403 = vperm.slane %v830, 4
        %v1404 = vlaneseq
        %v1405 = vshrl.u32 %v1404, 7
        %1407 = vset.pattern.permute.xlu0 %v1405
        %1408 = vperm.xlu0 %1407, %v1403
        %v1409 = vpop.permute.xlu0 %1408
        %v1410 = vlaneseq
        %v1411 = vshrl.u32 %v1410, 7
        %v1412 = vadd.s32 %v1411, 8
        %1413 = vset.pattern.permute.xlu0 %v1412
        %1414 = vperm.xlu0 %1413, %v1403
        %v1415 = vpop.permute.xlu0 %1414
        %v1416 = vperm.slane %v830, 5
        %v1417 = vlaneseq
        %v1418 = vshrl.u32 %v1417, 7
        %1420 = vset.pattern.permute.xlu0 %v1418
        %1421 = vperm.xlu0 %1420, %v1416
        %v1422 = vpop.permute.xlu0 %1421
        %v1423 = vlaneseq
        %v1424 = vshrl.u32 %v1423, 7
        %v1425 = vadd.s32 %v1424, 8
        %1426 = vset.pattern.permute.xlu0 %v1425
        %1427 = vperm.xlu0 %1426, %v1416
        %v1428 = vpop.permute.xlu0 %1427
        %v1429 = vperm.slane %v830, 6
        %v1430 = vlaneseq
        %v1431 = vshrl.u32 %v1430, 7
        %1433 = vset.pattern.permute.xlu0 %v1431
        %1434 = vperm.xlu0 %1433, %v1429
        %v1435 = vpop.permute.xlu0 %1434
        %v1436 = vlaneseq
        %v1437 = vshrl.u32 %v1436, 7
        %v1438 = vadd.s32 %v1437, 8
        %1439 = vset.pattern.permute.xlu0 %v1438
        %1440 = vperm.xlu0 %1439, %v1429
        %v1441 = vpop.permute.xlu0 %1440
        %v1442 = vperm.slane %v830, 7
        %v1443 = vlaneseq
        %v1444 = vshrl.u32 %v1443, 7
        %1446 = vset.pattern.permute.xlu0 %v1444
        %1447 = vperm.xlu0 %1446, %v1442
        %v1448 = vpop.permute.xlu0 %1447
        %v1449 = vlaneseq
        %v1450 = vshrl.u32 %v1449, 7
        %v1451 = vadd.s32 %v1450, 8
        %1452 = vset.pattern.permute.xlu0 %v1451
        %1453 = vperm.xlu0 %1452, %v1442
        %v1454 = vpop.permute.xlu0 %1453
        %vm1455 = vcmask 7168
        %v1456 = vsel %vm1455, %v837, %v941
        %v1457 = vsel %vm1455, %v843, %v947
        %v1458 = vsel %vm1455, %v850, %v954
        %v1459 = vsel %vm1455, %v856, %v960
        %v1460 = vsel %vm1455, %v863, %v967
        %v1461 = vsel %vm1455, %v869, %v973
        %v1462 = vsel %vm1455, %v876, %v980
        %v1463 = vsel %vm1455, %v882, %v986
        %v1464 = vsel %vm1455, %v889, %v993
        %v1465 = vsel %vm1455, %v895, %v999
        %v1466 = vsel %vm1455, %v902, %v1006
        %v1467 = vsel %vm1455, %v908, %v1012
        %v1468 = vsel %vm1455, %v915, %v1019
        %v1469 = vsel %vm1455, %v921, %v1025
        %v1470 = vsel %vm1455, %v928, %v1032
        %v1471 = vsel %vm1455, %v934, %v1038
        %vm1472 = vcmask 15360
        %v1473 = vsel %vm1472, %v1456, %v1045
        %v1474 = vsel %vm1472, %v1457, %v1051
        %v1475 = vsel %vm1472, %v1458, %v1058
        %v1476 = vsel %vm1472, %v1459, %v1064
        %v1477 = vsel %vm1472, %v1460, %v1071
        %v1478 = vsel %vm1472, %v1461, %v1077
        %v1479 = vsel %vm1472, %v1462, %v1084
        %v1480 = vsel %vm1472, %v1463, %v1090
        %v1481 = vsel %vm1472, %v1464, %v1097
        %v1482 = vsel %vm1472, %v1465, %v1103
        %v1483 = vsel %vm1472, %v1466, %v1110
        %v1484 = vsel %vm1472, %v1467, %v1116
        %v1485 = vsel %vm1472, %v1468, %v1123
        %v1486 = vsel %vm1472, %v1469, %v1129
        %v1487 = vsel %vm1472, %v1470, %v1136
        %v1488 = vsel %vm1472, %v1471, %v1142
        %vm1489 = vcmask 23552
        %v1490 = vsel %vm1489, %v1473, %v1149
        %v1491 = vsel %vm1489, %v1474, %v1155
        %v1492 = vsel %vm1489, %v1475, %v1162
        %v1493 = vsel %vm1489, %v1476, %v1168
        %v1494 = vsel %vm1489, %v1477, %v1175
        %v1495 = vsel %vm1489, %v1478, %v1181
        %v1496 = vsel %vm1489, %v1479, %v1188
        %v1497 = vsel %vm1489, %v1480, %v1194
        %v1498 = vsel %vm1489, %v1481, %v1201
        %v1499 = vsel %vm1489, %v1482, %v1207
        %v1500 = vsel %vm1489, %v1483, %v1214
        %v1501 = vsel %vm1489, %v1484, %v1220
        %v1502 = vsel %vm1489, %v1485, %v1227
        %v1503 = vsel %vm1489, %v1486, %v1233
        %v1504 = vsel %vm1489, %v1487, %v1240
        %v1505 = vsel %vm1489, %v1488, %v1246
        %vm1506 = vcmask 31744
        %v1507 = vsel %vm1506, %v1490, %v1253
        %v1508 = vsel %vm1506, %v1491, %v1259
        %v1509 = vsel %vm1506, %v1492, %v1266
        %v1510 = vsel %vm1506, %v1493, %v1272
        %v1511 = vsel %vm1506, %v1494, %v1279
        %v1512 = vsel %vm1506, %v1495, %v1285
        %v1513 = vsel %vm1506, %v1496, %v1292
        %v1514 = vsel %vm1506, %v1497, %v1298
        %v1515 = vsel %vm1506, %v1498, %v1305
        %v1516 = vsel %vm1506, %v1499, %v1311
        %v1517 = vsel %vm1506, %v1500, %v1318
        %v1518 = vsel %vm1506, %v1501, %v1324
        %v1519 = vsel %vm1506, %v1502, %v1331
        %v1520 = vsel %vm1506, %v1503, %v1337
        %v1521 = vsel %vm1506, %v1504, %v1344
        %v1522 = vsel %vm1506, %v1505, %v1350
        %vm1523 = vcmask 39936
        %v1524 = vsel %vm1523, %v1507, %v1357
        %v1525 = vsel %vm1523, %v1508, %v1363
        %v1526 = vsel %vm1523, %v1509, %v1370
        %v1527 = vsel %vm1523, %v1510, %v1376
        %v1528 = vsel %vm1523, %v1511, %v1383
        %v1529 = vsel %vm1523, %v1512, %v1389
        %v1530 = vsel %vm1523, %v1513, %v1396
        %v1531 = vsel %vm1523, %v1514, %v1402
        %v1532 = vsel %vm1523, %v1515, %v1409
        %v1533 = vsel %vm1523, %v1516, %v1415
        %v1534 = vsel %vm1523, %v1517, %v1422
        %v1535 = vsel %vm1523, %v1518, %v1428
        %v1536 = vsel %vm1523, %v1519, %v1435
        %v1537 = vsel %vm1523, %v1520, %v1441
        %v1538 = vsel %vm1523, %v1521, %v1448
        %v1539 = vsel %vm1523, %v1522, %v1454
        %vm1540 = vcmask 48128
        %v1541 = vsel %vm1540, %v1524, 0.0
        %v1542 = vsel %vm1540, %v1525, 0.0
        %v1543 = vsel %vm1540, %v1526, 0.0
        %v1544 = vsel %vm1540, %v1527, 0.0
        %v1545 = vsel %vm1540, %v1528, 0.0
        %v1546 = vsel %vm1540, %v1529, 0.0
        %v1547 = vsel %vm1540, %v1530, 0.0
        %v1548 = vsel %vm1540, %v1531, 0.0
        %v1549 = vsel %vm1540, %v1532, 0.0
        %v1550 = vsel %vm1540, %v1533, 0.0
        %v1551 = vsel %vm1540, %v1534, 0.0
        %v1552 = vsel %vm1540, %v1535, 0.0
        %v1553 = vsel %vm1540, %v1536, 0.0
        %v1554 = vsel %vm1540, %v1537, 0.0
        %v1555 = vsel %vm1540, %v1538, 0.0
        %v1556 = vsel %vm1540, %v1539, 0.0
        %vm1557 = vcmask 56320
        %v1558 = vsel %vm1557, %v1541, 0.0
        %v1559 = vsel %vm1557, %v1542, 0.0
        %v1560 = vsel %vm1557, %v1543, 0.0
        %v1561 = vsel %vm1557, %v1544, 0.0
        %v1562 = vsel %vm1557, %v1545, 0.0
        %v1563 = vsel %vm1557, %v1546, 0.0
        %v1564 = vsel %vm1557, %v1547, 0.0
        %v1565 = vsel %vm1557, %v1548, 0.0
        %v1566 = vsel %vm1557, %v1549, 0.0
        %v1567 = vsel %vm1557, %v1550, 0.0
        %v1568 = vsel %vm1557, %v1551, 0.0
        %v1569 = vsel %vm1557, %v1552, 0.0
        %v1570 = vsel %vm1557, %v1553, 0.0
        %v1571 = vsel %vm1557, %v1554, 0.0
        %v1572 = vsel %vm1557, %v1555, 0.0
        %v1573 = vsel %vm1557, %v1556, 0.0
        %v1574 = vld [vmem:[%s2] sm:$0xff]
        %vm1575 = vcmask 64512
        %v1577 = vsel %vm1575, %v1558, 0
        %v1580 = vsel %vm1575, %v1559, 0
        %v1583 = vsel %vm1575, %v1560, 0
        %v1586 = vsel %vm1575, %v1561, 0
        %v1589 = vsel %vm1575, %v1562, 0
        %v1592 = vsel %vm1575, %v1563, 0
        %v1595 = vsel %vm1575, %v1564, 0
        %v1598 = vsel %vm1575, %v1565, 0
        %v1601 = vsel %vm1575, %v1566, 0
        %v1604 = vsel %vm1575, %v1567, 0
        %v1607 = vsel %vm1575, %v1568, 0
        %v1610 = vsel %vm1575, %v1569, 0
        %v1613 = vsel %vm1575, %v1570, 0
        %v1616 = vsel %vm1575, %v1571, 0
        %v1619 = vsel %vm1575, %v1572, 0
        %v1622 = vsel %vm1575, %v1573, 0
        %1624 = vmatpush.msra.mxu0 0.0
        %1625 = vmatpush.msra.mxu0 0.0
        %1626 = vmatpush.msra.mxu0 0.0
        %1627 = vmatpush.msra.mxu0 0.0
        %1628 = vmatpush.msra.mxu0 0.0
        %1629 = vmatpush.msra.mxu0 0.0
        %1630 = vmatpush.msra.mxu0 0.0
        %1631 = vmatpush.msra.mxu0 0.0
        %1632 = vmatpush.msra.mxu0 0.0
        %1633 = vmatpush.msra.mxu0 0.0
        %1634 = vmatpush.msra.mxu0 0.0
        %1635 = vmatpush.msra.mxu0 0.0
        %1636 = vmatpush.msra.mxu0 0.0
        %1637 = vmatpush.msra.mxu0 0.0
        %1638 = vmatpush.msra.mxu0 0.0
        %v1639 = vand.u32 %v1574, 4294901760
        %1640 = vmatpush.msra.mxu0 %v1639
        %v1641 = vand.u32 %v1577, 4294901760
        %v1642 = vsub.f32 %v1577, %v1641
        %v1643 = vand.u32 %v1642, 4294901760
        %v1644 = vsub.f32 %v1642, %v1643
        %v1645 = vand.u32 %v1644, 4294901760
        %1646 = vmatmul.f32.gmra.mxu0 %v1645
        %v1647 = vpop.f32.mrf.mxu0
        %v1648 = vadd.f32 0.0, %v1647
        %v1649 = vand.u32 %v1580, 4294901760
        %v1650 = vsub.f32 %v1580, %v1649
        %v1651 = vand.u32 %v1650, 4294901760
        %v1652 = vsub.f32 %v1650, %v1651
        %v1653 = vand.u32 %v1652, 4294901760
        %1654 = vmatmul.f32.gmra.mxu0 %v1653
        %v1655 = vpop.f32.mrf.mxu0
        %v1656 = vadd.f32 0.0, %v1655
        %v1657 = vand.u32 %v1583, 4294901760
        %v1658 = vsub.f32 %v1583, %v1657
        %v1659 = vand.u32 %v1658, 4294901760
        %v1660 = vsub.f32 %v1658, %v1659
        %v1661 = vand.u32 %v1660, 4294901760
        %1662 = vmatmul.f32.gmra.mxu0 %v1661
        %v1663 = vpop.f32.mrf.mxu0
        %v1664 = vadd.f32 0.0, %v1663
        %v1665 = vand.u32 %v1586, 4294901760
        %v1666 = vsub.f32 %v1586, %v1665
        %v1667 = vand.u32 %v1666, 4294901760
        %v1668 = vsub.f32 %v1666, %v1667
        %v1669 = vand.u32 %v1668, 4294901760
        %1670 = vmatmul.f32.gmra.mxu0 %v1669
        %v1671 = vpop.f32.mrf.mxu0
        %v1672 = vadd.f32 0.0, %v1671
        %v1673 = vand.u32 %v1589, 4294901760
        %v1674 = vsub.f32 %v1589, %v1673
        %v1675 = vand.u32 %v1674, 4294901760
        %v1676 = vsub.f32 %v1674, %v1675
        %v1677 = vand.u32 %v1676, 4294901760
        %1678 = vmatmul.f32.gmra.mxu0 %v1677
        %v1679 = vpop.f32.mrf.mxu0
        %v1680 = vadd.f32 0.0, %v1679
        %v1681 = vand.u32 %v1592, 4294901760
        %v1682 = vsub.f32 %v1592, %v1681
        %v1683 = vand.u32 %v1682, 4294901760
        %v1684 = vsub.f32 %v1682, %v1683
        %v1685 = vand.u32 %v1684, 4294901760
        %1686 = vmatmul.f32.gmra.mxu0 %v1685
        %v1687 = vpop.f32.mrf.mxu0
        %v1688 = vadd.f32 0.0, %v1687
        %v1689 = vand.u32 %v1595, 4294901760
        %v1690 = vsub.f32 %v1595, %v1689
        %v1691 = vand.u32 %v1690, 4294901760
        %v1692 = vsub.f32 %v1690, %v1691
        %v1693 = vand.u32 %v1692, 4294901760
        %1694 = vmatmul.f32.gmra.mxu0 %v1693
        %v1695 = vpop.f32.mrf.mxu0
        %v1696 = vadd.f32 0.0, %v1695
        %v1697 = vand.u32 %v1598, 4294901760
        %v1698 = vsub.f32 %v1598, %v1697
        %v1699 = vand.u32 %v1698, 4294901760
        %v1700 = vsub.f32 %v1698, %v1699
        %v1701 = vand.u32 %v1700, 4294901760
        %1702 = vmatmul.f32.gmra.mxu0 %v1701
        %v1703 = vpop.f32.mrf.mxu0
        %v1704 = vadd.f32 0.0, %v1703
        %v1705 = vand.u32 %v1601, 4294901760
        %v1706 = vsub.f32 %v1601, %v1705
        %v1707 = vand.u32 %v1706, 4294901760
        %v1708 = vsub.f32 %v1706, %v1707
        %v1709 = vand.u32 %v1708, 4294901760
        %1710 = vmatmul.f32.gmra.mxu0 %v1709
        %v1711 = vpop.f32.mrf.mxu0
        %v1712 = vadd.f32 0.0, %v1711
        %v1713 = vand.u32 %v1604, 4294901760
        %v1714 = vsub.f32 %v1604, %v1713
        %v1715 = vand.u32 %v1714, 4294901760
        %v1716 = vsub.f32 %v1714, %v1715
        %v1717 = vand.u32 %v1716, 4294901760
        %1718 = vmatmul.f32.gmra.mxu0 %v1717
        %v1719 = vpop.f32.mrf.mxu0
        %v1720 = vadd.f32 0.0, %v1719
        %v1721 = vand.u32 %v1607, 4294901760
        %v1722 = vsub.f32 %v1607, %v1721
        %v1723 = vand.u32 %v1722, 4294901760
        %v1724 = vsub.f32 %v1722, %v1723
        %v1725 = vand.u32 %v1724, 4294901760
        %1726 = vmatmul.f32.gmra.mxu0 %v1725
        %v1727 = vpop.f32.mrf.mxu0
        %v1728 = vadd.f32 0.0, %v1727
        %v1729 = vand.u32 %v1610, 4294901760
        %v1730 = vsub.f32 %v1610, %v1729
        %v1731 = vand.u32 %v1730, 4294901760
        %v1732 = vsub.f32 %v1730, %v1731
        %v1733 = vand.u32 %v1732, 4294901760
        %1734 = vmatmul.f32.gmra.mxu0 %v1733
        %v1735 = vpop.f32.mrf.mxu0
        %v1736 = vadd.f32 0.0, %v1735
        %v1737 = vand.u32 %v1613, 4294901760
        %v1738 = vsub.f32 %v1613, %v1737
        %v1739 = vand.u32 %v1738, 4294901760
        %v1740 = vsub.f32 %v1738, %v1739
        %v1741 = vand.u32 %v1740, 4294901760
        %1742 = vmatmul.f32.gmra.mxu0 %v1741
        %v1743 = vpop.f32.mrf.mxu0
        %v1744 = vadd.f32 0.0, %v1743
        %v1745 = vand.u32 %v1616, 4294901760
        %v1746 = vsub.f32 %v1616, %v1745
        %v1747 = vand.u32 %v1746, 4294901760
        %v1748 = vsub.f32 %v1746, %v1747
        %v1749 = vand.u32 %v1748, 4294901760
        %1750 = vmatmul.f32.gmra.mxu0 %v1749
        %v1751 = vpop.f32.mrf.mxu0
        %v1752 = vadd.f32 0.0, %v1751
        %v1753 = vand.u32 %v1619, 4294901760
        %v1754 = vsub.f32 %v1619, %v1753
        %v1755 = vand.u32 %v1754, 4294901760
        %v1756 = vsub.f32 %v1754, %v1755
        %v1757 = vand.u32 %v1756, 4294901760
        %1758 = vmatmul.f32.gmra.mxu0 %v1757
        %v1759 = vpop.f32.mrf.mxu0
        %v1760 = vadd.f32 0.0, %v1759
        %v1761 = vand.u32 %v1622, 4294901760
        %v1762 = vsub.f32 %v1622, %v1761
        %v1763 = vand.u32 %v1762, 4294901760
        %v1764 = vsub.f32 %v1762, %v1763
        %v1765 = vand.u32 %v1764, 4294901760
        %1766 = vmatmul.f32.gmra.mxu0 %v1765
        %v1767 = vpop.f32.mrf.mxu0
        %v1768 = vadd.f32 0.0, %v1767
        %1769 = vdwg.mxu0
        %1770 = vmatpush.msra.mxu0 0.0
        %1771 = vmatpush.msra.mxu0 0.0
        %1772 = vmatpush.msra.mxu0 0.0
        %1773 = vmatpush.msra.mxu0 0.0
        %1774 = vmatpush.msra.mxu0 0.0
        %1775 = vmatpush.msra.mxu0 0.0
        %1776 = vmatpush.msra.mxu0 0.0
        %1777 = vmatpush.msra.mxu0 0.0
        %1778 = vmatpush.msra.mxu0 0.0
        %1779 = vmatpush.msra.mxu0 0.0
        %1780 = vmatpush.msra.mxu0 0.0
        %1781 = vmatpush.msra.mxu0 0.0
        %1782 = vmatpush.msra.mxu0 0.0
        %1783 = vmatpush.msra.mxu0 0.0
        %1784 = vmatpush.msra.mxu0 0.0
        %v1785 = vand.u32 %v1574, 4294901760
        %v1786 = vsub.f32 %v1574, %v1785
        %v1787 = vand.u32 %v1786, 4294901760
        %v1788 = vsub.f32 %v1786, %v1787
        %v1789 = vand.u32 %v1788, 4294901760
        %1790 = vmatpush.msra.mxu0 %v1789
        %v1791 = vand.u32 %v1577, 4294901760
        %1792 = vmatmul.f32.gmra.mxu0 %v1791
        %v1793 = vpop.f32.mrf.mxu0
        %v1794 = vadd.f32 %v1648, %v1793
        %v1795 = vand.u32 %v1580, 4294901760
        %1796 = vmatmul.f32.gmra.mxu0 %v1795
        %v1797 = vpop.f32.mrf.mxu0
        %v1798 = vadd.f32 %v1656, %v1797
        %v1799 = vand.u32 %v1583, 4294901760
        %1800 = vmatmul.f32.gmra.mxu0 %v1799
        %v1801 = vpop.f32.mrf.mxu0
        %v1802 = vadd.f32 %v1664, %v1801
        %v1803 = vand.u32 %v1586, 4294901760
        %1804 = vmatmul.f32.gmra.mxu0 %v1803
        %v1805 = vpop.f32.mrf.mxu0
        %v1806 = vadd.f32 %v1672, %v1805
        %v1807 = vand.u32 %v1589, 4294901760
        %1808 = vmatmul.f32.gmra.mxu0 %v1807
        %v1809 = vpop.f32.mrf.mxu0
        %v1810 = vadd.f32 %v1680, %v1809
        %v1811 = vand.u32 %v1592, 4294901760
        %1812 = vmatmul.f32.gmra.mxu0 %v1811
        %v1813 = vpop.f32.mrf.mxu0
        %v1814 = vadd.f32 %v1688, %v1813
        %v1815 = vand.u32 %v1595, 4294901760
        %1816 = vmatmul.f32.gmra.mxu0 %v1815
        %v1817 = vpop.f32.mrf.mxu0
        %v1818 = vadd.f32 %v1696, %v1817
        %v1819 = vand.u32 %v1598, 4294901760
        %1820 = vmatmul.f32.gmra.mxu0 %v1819
        %v1821 = vpop.f32.mrf.mxu0
        %v1822 = vadd.f32 %v1704, %v1821
        %v1823 = vand.u32 %v1601, 4294901760
        %1824 = vmatmul.f32.gmra.mxu0 %v1823
        %v1825 = vpop.f32.mrf.mxu0
        %v1826 = vadd.f32 %v1712, %v1825
        %v1827 = vand.u32 %v1604, 4294901760
        %1828 = vmatmul.f32.gmra.mxu0 %v1827
        %v1829 = vpop.f32.mrf.mxu0
        %v1830 = vadd.f32 %v1720, %v1829
        %v1831 = vand.u32 %v1607, 4294901760
        %1832 = vmatmul.f32.gmra.mxu0 %v1831
        %v1833 = vpop.f32.mrf.mxu0
        %v1834 = vadd.f32 %v1728, %v1833
        %v1835 = vand.u32 %v1610, 4294901760
        %1836 = vmatmul.f32.gmra.mxu0 %v1835
        %v1837 = vpop.f32.mrf.mxu0
        %v1838 = vadd.f32 %v1736, %v1837
        %v1839 = vand.u32 %v1613, 4294901760
        %1840 = vmatmul.f32.gmra.mxu0 %v1839
        %v1841 = vpop.f32.mrf.mxu0
        %v1842 = vadd.f32 %v1744, %v1841
        %v1843 = vand.u32 %v1616, 4294901760
        %1844 = vmatmul.f32.gmra.mxu0 %v1843
        %v1845 = vpop.f32.mrf.mxu0
        %v1846 = vadd.f32 %v1752, %v1845
        %v1847 = vand.u32 %v1619, 4294901760
        %1848 = vmatmul.f32.gmra.mxu0 %v1847
        %v1849 = vpop.f32.mrf.mxu0
        %v1850 = vadd.f32 %v1760, %v1849
        %v1851 = vand.u32 %v1622, 4294901760
        %1852 = vmatmul.f32.gmra.mxu0 %v1851
        %v1853 = vpop.f32.mrf.mxu0
        %v1854 = vadd.f32 %v1768, %v1853
        %1855 = vdwg.mxu0
        %1856 = vmatpush.msra.mxu0 0.0
        %1857 = vmatpush.msra.mxu0 0.0
        %1858 = vmatpush.msra.mxu0 0.0
        %1859 = vmatpush.msra.mxu0 0.0
        %1860 = vmatpush.msra.mxu0 0.0
        %1861 = vmatpush.msra.mxu0 0.0
        %1862 = vmatpush.msra.mxu0 0.0
        %1863 = vmatpush.msra.mxu0 0.0
        %1864 = vmatpush.msra.mxu0 0.0
        %1865 = vmatpush.msra.mxu0 0.0
        %1866 = vmatpush.msra.mxu0 0.0
        %1867 = vmatpush.msra.mxu0 0.0
        %1868 = vmatpush.msra.mxu0 0.0
        %1869 = vmatpush.msra.mxu0 0.0
        %1870 = vmatpush.msra.mxu0 0.0
        %v1871 = vand.u32 %v1574, 4294901760
        %v1872 = vsub.f32 %v1574, %v1871
        %1873 = vmatpush.msra.mxu0 %v1872
        %v1874 = vand.u32 %v1577, 4294901760
        %v1875 = vsub.f32 %v1577, %v1874
        %1876 = vmatmul.f32.gmra.mxu0 %v1875
        %v1877 = vpop.f32.mrf.mxu0
        %v1878 = vadd.f32 %v1794, %v1877
        %v1879 = vand.u32 %v1580, 4294901760
        %v1880 = vsub.f32 %v1580, %v1879
        %1881 = vmatmul.f32.gmra.mxu0 %v1880
        %v1882 = vpop.f32.mrf.mxu0
        %v1883 = vadd.f32 %v1798, %v1882
        %v1884 = vand.u32 %v1583, 4294901760
        %v1885 = vsub.f32 %v1583, %v1884
        %1886 = vmatmul.f32.gmra.mxu0 %v1885
        %v1887 = vpop.f32.mrf.mxu0
        %v1888 = vadd.f32 %v1802, %v1887
        %v1889 = vand.u32 %v1586, 4294901760
        %v1890 = vsub.f32 %v1586, %v1889
        %1891 = vmatmul.f32.gmra.mxu0 %v1890
        %v1892 = vpop.f32.mrf.mxu0
        %v1893 = vadd.f32 %v1806, %v1892
        %v1894 = vand.u32 %v1589, 4294901760
        %v1895 = vsub.f32 %v1589, %v1894
        %1896 = vmatmul.f32.gmra.mxu0 %v1895
        %v1897 = vpop.f32.mrf.mxu0
        %v1898 = vadd.f32 %v1810, %v1897
        %v1899 = vand.u32 %v1592, 4294901760
        %v1900 = vsub.f32 %v1592, %v1899
        %1901 = vmatmul.f32.gmra.mxu0 %v1900
        %v1902 = vpop.f32.mrf.mxu0
        %v1903 = vadd.f32 %v1814, %v1902
        %v1904 = vand.u32 %v1595, 4294901760
        %v1905 = vsub.f32 %v1595, %v1904
        %1906 = vmatmul.f32.gmra.mxu0 %v1905
        %v1907 = vpop.f32.mrf.mxu0
        %v1908 = vadd.f32 %v1818, %v1907
        %v1909 = vand.u32 %v1598, 4294901760
        %v1910 = vsub.f32 %v1598, %v1909
        %1911 = vmatmul.f32.gmra.mxu0 %v1910
        %v1912 = vpop.f32.mrf.mxu0
        %v1913 = vadd.f32 %v1822, %v1912
        %v1914 = vand.u32 %v1601, 4294901760
        %v1915 = vsub.f32 %v1601, %v1914
        %1916 = vmatmul.f32.gmra.mxu0 %v1915
        %v1917 = vpop.f32.mrf.mxu0
        %v1918 = vadd.f32 %v1826, %v1917
        %v1919 = vand.u32 %v1604, 4294901760
        %v1920 = vsub.f32 %v1604, %v1919
        %1921 = vmatmul.f32.gmra.mxu0 %v1920
        %v1922 = vpop.f32.mrf.mxu0
        %v1923 = vadd.f32 %v1830, %v1922
        %v1924 = vand.u32 %v1607, 4294901760
        %v1925 = vsub.f32 %v1607, %v1924
        %1926 = vmatmul.f32.gmra.mxu0 %v1925
        %v1927 = vpop.f32.mrf.mxu0
        %v1928 = vadd.f32 %v1834, %v1927
        %v1929 = vand.u32 %v1610, 4294901760
        %v1930 = vsub.f32 %v1610, %v1929
        %1931 = vmatmul.f32.gmra.mxu0 %v1930
        %v1932 = vpop.f32.mrf.mxu0
        %v1933 = vadd.f32 %v1838, %v1932
        %v1934 = vand.u32 %v1613, 4294901760
        %v1935 = vsub.f32 %v1613, %v1934
        %1936 = vmatmul.f32.gmra.mxu0 %v1935
        %v1937 = vpop.f32.mrf.mxu0
        %v1938 = vadd.f32 %v1842, %v1937
        %v1939 = vand.u32 %v1616, 4294901760
        %v1940 = vsub.f32 %v1616, %v1939
        %1941 = vmatmul.f32.gmra.mxu0 %v1940
        %v1942 = vpop.f32.mrf.mxu0
        %v1943 = vadd.f32 %v1846, %v1942
        %v1944 = vand.u32 %v1619, 4294901760
        %v1945 = vsub.f32 %v1619, %v1944
        %1946 = vmatmul.f32.gmra.mxu0 %v1945
        %v1947 = vpop.f32.mrf.mxu0
        %v1948 = vadd.f32 %v1850, %v1947
        %v1949 = vand.u32 %v1622, 4294901760
        %v1950 = vsub.f32 %v1622, %v1949
        %1951 = vmatmul.f32.gmra.mxu0 %v1950
        %v1952 = vpop.f32.mrf.mxu0
        %v1953 = vadd.f32 %v1854, %v1952
        %1954 = vdwg.mxu0
        %1955 = vmatpush.msra.mxu0 0.0
        %1956 = vmatpush.msra.mxu0 0.0
        %1957 = vmatpush.msra.mxu0 0.0
        %1958 = vmatpush.msra.mxu0 0.0
        %1959 = vmatpush.msra.mxu0 0.0
        %1960 = vmatpush.msra.mxu0 0.0
        %1961 = vmatpush.msra.mxu0 0.0
        %1962 = vmatpush.msra.mxu0 0.0
        %1963 = vmatpush.msra.mxu0 0.0
        %1964 = vmatpush.msra.mxu0 0.0
        %1965 = vmatpush.msra.mxu0 0.0
        %1966 = vmatpush.msra.mxu0 0.0
        %1967 = vmatpush.msra.mxu0 0.0
        %1968 = vmatpush.msra.mxu0 0.0
        %1969 = vmatpush.msra.mxu0 0.0
        %v1970 = vand.u32 %v1574, 4294901760
        %1971 = vmatpush.msra.mxu0 %v1970
        %v1972 = vand.u32 %v1577, 4294901760
        %v1973 = vsub.f32 %v1577, %v1972
        %v1974 = vand.u32 %v1973, 4294901760
        %1975 = vmatmul.f32.gmra.mxu0 %v1974
        %v1976 = vpop.f32.mrf.mxu0
        %v1977 = vadd.f32 %v1878, %v1976
        %v1978 = vand.u32 %v1580, 4294901760
        %v1979 = vsub.f32 %v1580, %v1978
        %v1980 = vand.u32 %v1979, 4294901760
        %1981 = vmatmul.f32.gmra.mxu0 %v1980
        %v1982 = vpop.f32.mrf.mxu0
        %v1983 = vadd.f32 %v1883, %v1982
        %v1984 = vand.u32 %v1583, 4294901760
        %v1985 = vsub.f32 %v1583, %v1984
        %v1986 = vand.u32 %v1985, 4294901760
        %1987 = vmatmul.f32.gmra.mxu0 %v1986
        %v1988 = vpop.f32.mrf.mxu0
        %v1989 = vadd.f32 %v1888, %v1988
        %v1990 = vand.u32 %v1586, 4294901760
        %v1991 = vsub.f32 %v1586, %v1990
        %v1992 = vand.u32 %v1991, 4294901760
        %1993 = vmatmul.f32.gmra.mxu0 %v1992
        %v1994 = vpop.f32.mrf.mxu0
        %v1995 = vadd.f32 %v1893, %v1994
        %v1996 = vand.u32 %v1589, 4294901760
        %v1997 = vsub.f32 %v1589, %v1996
        %v1998 = vand.u32 %v1997, 4294901760
        %1999 = vmatmul.f32.gmra.mxu0 %v1998
        %v2000 = vpop.f32.mrf.mxu0
        %v2001 = vadd.f32 %v1898, %v2000
        %v2002 = vand.u32 %v1592, 4294901760
        %v2003 = vsub.f32 %v1592, %v2002
        %v2004 = vand.u32 %v2003, 4294901760
        %2005 = vmatmul.f32.gmra.mxu0 %v2004
        %v2006 = vpop.f32.mrf.mxu0
        %v2007 = vadd.f32 %v1903, %v2006
        %v2008 = vand.u32 %v1595, 4294901760
        %v2009 = vsub.f32 %v1595, %v2008
        %v2010 = vand.u32 %v2009, 4294901760
        %2011 = vmatmul.f32.gmra.mxu0 %v2010
        %v2012 = vpop.f32.mrf.mxu0
        %v2013 = vadd.f32 %v1908, %v2012
        %v2014 = vand.u32 %v1598, 4294901760
        %v2015 = vsub.f32 %v1598, %v2014
        %v2016 = vand.u32 %v2015, 4294901760
        %2017 = vmatmul.f32.gmra.mxu0 %v2016
        %v2018 = vpop.f32.mrf.mxu0
        %v2019 = vadd.f32 %v1913, %v2018
        %v2020 = vand.u32 %v1601, 4294901760
        %v2021 = vsub.f32 %v1601, %v2020
        %v2022 = vand.u32 %v2021, 4294901760
        %2023 = vmatmul.f32.gmra.mxu0 %v2022
        %v2024 = vpop.f32.mrf.mxu0
        %v2025 = vadd.f32 %v1918, %v2024
        %v2026 = vand.u32 %v1604, 4294901760
        %v2027 = vsub.f32 %v1604, %v2026
        %v2028 = vand.u32 %v2027, 4294901760
        %2029 = vmatmul.f32.gmra.mxu0 %v2028
        %v2030 = vpop.f32.mrf.mxu0
        %v2031 = vadd.f32 %v1923, %v2030
        %v2032 = vand.u32 %v1607, 4294901760
        %v2033 = vsub.f32 %v1607, %v2032
        %v2034 = vand.u32 %v2033, 4294901760
        %2035 = vmatmul.f32.gmra.mxu0 %v2034
        %v2036 = vpop.f32.mrf.mxu0
        %v2037 = vadd.f32 %v1928, %v2036
        %v2038 = vand.u32 %v1610, 4294901760
        %v2039 = vsub.f32 %v1610, %v2038
        %v2040 = vand.u32 %v2039, 4294901760
        %2041 = vmatmul.f32.gmra.mxu0 %v2040
        %v2042 = vpop.f32.mrf.mxu0
        %v2043 = vadd.f32 %v1933, %v2042
        %v2044 = vand.u32 %v1613, 4294901760
        %v2045 = vsub.f32 %v1613, %v2044
        %v2046 = vand.u32 %v2045, 4294901760
        %2047 = vmatmul.f32.gmra.mxu0 %v2046
        %v2048 = vpop.f32.mrf.mxu0
        %v2049 = vadd.f32 %v1938, %v2048
        %v2050 = vand.u32 %v1616, 4294901760
        %v2051 = vsub.f32 %v1616, %v2050
        %v2052 = vand.u32 %v2051, 4294901760
        %2053 = vmatmul.f32.gmra.mxu0 %v2052
        %v2054 = vpop.f32.mrf.mxu0
        %v2055 = vadd.f32 %v1943, %v2054
        %v2056 = vand.u32 %v1619, 4294901760
        %v2057 = vsub.f32 %v1619, %v2056
        %v2058 = vand.u32 %v2057, 4294901760
        %2059 = vmatmul.f32.gmra.mxu0 %v2058
        %v2060 = vpop.f32.mrf.mxu0
        %v2061 = vadd.f32 %v1948, %v2060
        %v2062 = vand.u32 %v1622, 4294901760
        %v2063 = vsub.f32 %v1622, %v2062
        %v2064 = vand.u32 %v2063, 4294901760
        %2065 = vmatmul.f32.gmra.mxu0 %v2064
        %v2066 = vpop.f32.mrf.mxu0
        %v2067 = vadd.f32 %v1953, %v2066
        %2068 = vdwg.mxu0
        %2069 = vmatpush.msra.mxu0 0.0
        %2070 = vmatpush.msra.mxu0 0.0
        %2071 = vmatpush.msra.mxu0 0.0
        %2072 = vmatpush.msra.mxu0 0.0
        %2073 = vmatpush.msra.mxu0 0.0
        %2074 = vmatpush.msra.mxu0 0.0
        %2075 = vmatpush.msra.mxu0 0.0
        %2076 = vmatpush.msra.mxu0 0.0
        %2077 = vmatpush.msra.mxu0 0.0
        %2078 = vmatpush.msra.mxu0 0.0
        %2079 = vmatpush.msra.mxu0 0.0
        %2080 = vmatpush.msra.mxu0 0.0
        %2081 = vmatpush.msra.mxu0 0.0
        %2082 = vmatpush.msra.mxu0 0.0
        %2083 = vmatpush.msra.mxu0 0.0
        %v2084 = vand.u32 %v1574, 4294901760
        %v2085 = vsub.f32 %v1574, %v2084
        %v2086 = vand.u32 %v2085, 4294901760
        %2087 = vmatpush.msra.mxu0 %v2086
        %v2088 = vand.u32 %v1577, 4294901760
        %2089 = vmatmul.f32.gmra.mxu0 %v2088
        %v2090 = vpop.f32.mrf.mxu0
        %v2091 = vadd.f32 %v1977, %v2090
        %v2092 = vand.u32 %v1580, 4294901760
        %2093 = vmatmul.f32.gmra.mxu0 %v2092
        %v2094 = vpop.f32.mrf.mxu0
        %v2095 = vadd.f32 %v1983, %v2094
        %v2096 = vand.u32 %v1583, 4294901760
        %2097 = vmatmul.f32.gmra.mxu0 %v2096
        %v2098 = vpop.f32.mrf.mxu0
        %v2099 = vadd.f32 %v1989, %v2098
        %v2100 = vand.u32 %v1586, 4294901760
        %2101 = vmatmul.f32.gmra.mxu0 %v2100
        %v2102 = vpop.f32.mrf.mxu0
        %v2103 = vadd.f32 %v1995, %v2102
        %v2104 = vand.u32 %v1589, 4294901760
        %2105 = vmatmul.f32.gmra.mxu0 %v2104
        %v2106 = vpop.f32.mrf.mxu0
        %v2107 = vadd.f32 %v2001, %v2106
        %v2108 = vand.u32 %v1592, 4294901760
        %2109 = vmatmul.f32.gmra.mxu0 %v2108
        %v2110 = vpop.f32.mrf.mxu0
        %v2111 = vadd.f32 %v2007, %v2110
        %v2112 = vand.u32 %v1595, 4294901760
        %2113 = vmatmul.f32.gmra.mxu0 %v2112
        %v2114 = vpop.f32.mrf.mxu0
        %v2115 = vadd.f32 %v2013, %v2114
        %v2116 = vand.u32 %v1598, 4294901760
        %2117 = vmatmul.f32.gmra.mxu0 %v2116
        %v2118 = vpop.f32.mrf.mxu0
        %v2119 = vadd.f32 %v2019, %v2118
        %v2120 = vand.u32 %v1601, 4294901760
        %2121 = vmatmul.f32.gmra.mxu0 %v2120
        %v2122 = vpop.f32.mrf.mxu0
        %v2123 = vadd.f32 %v2025, %v2122
        %v2124 = vand.u32 %v1604, 4294901760
        %2125 = vmatmul.f32.gmra.mxu0 %v2124
        %v2126 = vpop.f32.mrf.mxu0
        %v2127 = vadd.f32 %v2031, %v2126
        %v2128 = vand.u32 %v1607, 4294901760
        %2129 = vmatmul.f32.gmra.mxu0 %v2128
        %v2130 = vpop.f32.mrf.mxu0
        %v2131 = vadd.f32 %v2037, %v2130
        %v2132 = vand.u32 %v1610, 4294901760
        %2133 = vmatmul.f32.gmra.mxu0 %v2132
        %v2134 = vpop.f32.mrf.mxu0
        %v2135 = vadd.f32 %v2043, %v2134
        %v2136 = vand.u32 %v1613, 4294901760
        %2137 = vmatmul.f32.gmra.mxu0 %v2136
        %v2138 = vpop.f32.mrf.mxu0
        %v2139 = vadd.f32 %v2049, %v2138
        %v2140 = vand.u32 %v1616, 4294901760
        %2141 = vmatmul.f32.gmra.mxu0 %v2140
        %v2142 = vpop.f32.mrf.mxu0
        %v2143 = vadd.f32 %v2055, %v2142
        %v2144 = vand.u32 %v1619, 4294901760
        %2145 = vmatmul.f32.gmra.mxu0 %v2144
        %v2146 = vpop.f32.mrf.mxu0
        %v2147 = vadd.f32 %v2061, %v2146
        %v2148 = vand.u32 %v1622, 4294901760
        %2149 = vmatmul.f32.gmra.mxu0 %v2148
        %v2150 = vpop.f32.mrf.mxu0
        %v2151 = vadd.f32 %v2067, %v2150
        %2152 = vdwg.mxu0
        %2153 = vmatpush.msra.mxu0 0.0
        %2154 = vmatpush.msra.mxu0 0.0
        %2155 = vmatpush.msra.mxu0 0.0
        %2156 = vmatpush.msra.mxu0 0.0
        %2157 = vmatpush.msra.mxu0 0.0
        %2158 = vmatpush.msra.mxu0 0.0
        %2159 = vmatpush.msra.mxu0 0.0
        %2160 = vmatpush.msra.mxu0 0.0
        %2161 = vmatpush.msra.mxu0 0.0
        %2162 = vmatpush.msra.mxu0 0.0
        %2163 = vmatpush.msra.mxu0 0.0
        %2164 = vmatpush.msra.mxu0 0.0
        %2165 = vmatpush.msra.mxu0 0.0
        %2166 = vmatpush.msra.mxu0 0.0
        %2167 = vmatpush.msra.mxu0 0.0
        %v2168 = vand.u32 %v1574, 4294901760
        %2169 = vmatpush.msra.mxu0 %v2168
        %v2170 = vand.u32 %v1577, 4294901760
        %2171 = vmatmul.f32.gmra.mxu0 %v2170
        %v2172 = vpop.f32.mrf.mxu0
        %v2173 = vadd.f32 %v2091, %v2172
        %v2174 = vand.u32 %v1580, 4294901760
        %2175 = vmatmul.f32.gmra.mxu0 %v2174
        %v2176 = vpop.f32.mrf.mxu0
        %v2177 = vadd.f32 %v2095, %v2176
        %v2178 = vand.u32 %v1583, 4294901760
        %2179 = vmatmul.f32.gmra.mxu0 %v2178
        %v2180 = vpop.f32.mrf.mxu0
        %v2181 = vadd.f32 %v2099, %v2180
        %v2182 = vand.u32 %v1586, 4294901760
        %2183 = vmatmul.f32.gmra.mxu0 %v2182
        %v2184 = vpop.f32.mrf.mxu0
        %v2185 = vadd.f32 %v2103, %v2184
        %v2186 = vand.u32 %v1589, 4294901760
        %2187 = vmatmul.f32.gmra.mxu0 %v2186
        %v2188 = vpop.f32.mrf.mxu0
        %v2189 = vadd.f32 %v2107, %v2188
        %v2190 = vand.u32 %v1592, 4294901760
        %2191 = vmatmul.f32.gmra.mxu0 %v2190
        %v2192 = vpop.f32.mrf.mxu0
        %v2193 = vadd.f32 %v2111, %v2192
        %v2194 = vand.u32 %v1595, 4294901760
        %2195 = vmatmul.f32.gmra.mxu0 %v2194
        %v2196 = vpop.f32.mrf.mxu0
        %v2197 = vadd.f32 %v2115, %v2196
        %v2198 = vand.u32 %v1598, 4294901760
        %2199 = vmatmul.f32.gmra.mxu0 %v2198
        %v2200 = vpop.f32.mrf.mxu0
        %v2201 = vadd.f32 %v2119, %v2200
        %v2202 = vand.u32 %v1601, 4294901760
        %2203 = vmatmul.f32.gmra.mxu0 %v2202
        %v2204 = vpop.f32.mrf.mxu0
        %v2205 = vadd.f32 %v2123, %v2204
        %v2206 = vand.u32 %v1604, 4294901760
        %2207 = vmatmul.f32.gmra.mxu0 %v2206
        %v2208 = vpop.f32.mrf.mxu0
        %v2209 = vadd.f32 %v2127, %v2208
        %v2210 = vand.u32 %v1607, 4294901760
        %2211 = vmatmul.f32.gmra.mxu0 %v2210
        %v2212 = vpop.f32.mrf.mxu0
        %v2213 = vadd.f32 %v2131, %v2212
        %v2214 = vand.u32 %v1610, 4294901760
        %2215 = vmatmul.f32.gmra.mxu0 %v2214
        %v2216 = vpop.f32.mrf.mxu0
        %v2217 = vadd.f32 %v2135, %v2216
        %v2218 = vand.u32 %v1613, 4294901760
        %2219 = vmatmul.f32.gmra.mxu0 %v2218
        %v2220 = vpop.f32.mrf.mxu0
        %v2221 = vadd.f32 %v2139, %v2220
        %v2222 = vand.u32 %v1616, 4294901760
        %2223 = vmatmul.f32.gmra.mxu0 %v2222
        %v2224 = vpop.f32.mrf.mxu0
        %v2225 = vadd.f32 %v2143, %v2224
        %v2226 = vand.u32 %v1619, 4294901760
        %2227 = vmatmul.f32.gmra.mxu0 %v2226
        %v2228 = vpop.f32.mrf.mxu0
        %v2229 = vadd.f32 %v2147, %v2228
        %v2230 = vand.u32 %v1622, 4294901760
        %2231 = vmatmul.f32.gmra.mxu0 %v2230
        %v2232 = vpop.f32.mrf.mxu0
        %v2233 = vadd.f32 %v2151, %v2232
        %2234 = vdwg.mxu0
        %2235 = vst [vmem:[%s174] sm:$0xff] %v2173
        %2236 = vst [vmem:[%s174 + $0x8] sm:$0xff] %v2177
        %2237 = vst [vmem:[%s174 + $0x10] sm:$0xff] %v2181
        %2238 = vst [vmem:[%s174 + $0x18] sm:$0xff] %v2185
        %2239 = vst [vmem:[%s174 + $0x20] sm:$0xff] %v2189
        %2240 = vst [vmem:[%s174 + $0x28] sm:$0xff] %v2193
        %2241 = vst [vmem:[%s174 + $0x30] sm:$0xff] %v2197
        %2242 = vst [vmem:[%s174 + $0x38] sm:$0xff] %v2201
        %2243 = vst [vmem:[%s174 + $0x40] sm:$0xff] %v2205
        %2244 = vst [vmem:[%s174 + $0x48] sm:$0xff] %v2209
        %2245 = vst [vmem:[%s174 + $0x50] sm:$0xff] %v2213
        %2246 = vst [vmem:[%s174 + $0x58] sm:$0xff] %v2217
        %2247 = vst [vmem:[%s174 + $0x60] sm:$0xff] %v2221
        %2248 = vst [vmem:[%s174 + $0x68] sm:$0xff] %v2225
        %2249 = vst [vmem:[%s174 + $0x70] sm:$0xff] %v2229
        %2250 = vst [vmem:[%s174 + $0x78] sm:$0xff] %v2233
        %s2251 = sand.u32 %s98, 1
        %s2252 = scalar_lea.sflag [#allocation3], %s2251
        %s2253 = sand.u32 %s98, 1
        %s2254 = smul.addr %s2253, 128
        %s2255 = scalar_lea.vmem [#allocation2], %s2254
        // Predicated region
        $region33: #{tpu_custom_call.1} parent=31 // pred_check
          %p2256 = pneg %p108
        $region34: #{tpu_custom_call.1} parent=31 // pred_check_branch
          %2258 = sbr.rel (%p2256) target = $region36
        $region35: #{tpu_custom_call.1} parent=31 // pred_region
          %s2259 = smul.u32 16, %s17
          %2261 = vsyncadd %s2252, 0
          %s2262 = smul.addr %s2259, 8
          %s2263 = scalar_lea.hbm %s3, %s2262
          %s2264 = sshll.u32 %s2255, 4
          %s2265 = int_to_ptr.vmem [resolvable:$true] %s2264
          %s2266 = sshll.u32 %s2263, 4
          %s2267 = int_to_ptr.hbm [resolvable:$true] %s2266
          %2272 = dma.vmem_to_hbm [thread:$0]  %s2265, 2048, %s2267, %s2252, 128, 128, 8
        $region36: #{tpu_custom_call.1} parent=31 // pred_fallthru
          _
      $region32: #{tpu_custom_call.1} parent=5 // pred_fallthru
        _
      %p2273 = scmp.le.s32.totalorder 2, %s12
      // Predicated region
      $region37: #{tpu_custom_call.1} parent=5 // pred_check
        %p2274 = pneg %p2273
      $region38: #{tpu_custom_call.1} parent=5 // pred_check_branch
        %2276 = sbr.rel (%p2274) target = $region40
      $region39: #{tpu_custom_call.1} parent=5 // pred_region
        %s2277 = ssub.s32 %s12, 2
        // Predicated region
        $region41: #{tpu_custom_call.1} parent=39 // pred_check
          %p2278 = pneg %p114
        $region42: #{tpu_custom_call.1} parent=39 // pred_check_branch
          %2280 = sbr.rel (%p2278) target = $region44
        $region43: #{tpu_custom_call.1} parent=39 // pred_region
          %s2281 = sand.u32 %s99, 1
          %s2282 = scalar_lea.sflag [#allocation3], %s2281
          %s2283 = sand.u32 %s99, 1
          %s2284 = smul.addr %s2283, 128
          %s2285 = scalar_lea.vmem [#allocation2], %s2284
          %2287 = dma.done %s2282, 2048
        $region44: #{tpu_custom_call.1} parent=39 // pred_fallthru
          _
      $region40: #{tpu_custom_call.1} parent=5 // pred_fallthru
        _
    $region6: #{tpu_custom_call.1} parent=1 // loop_footer
      %s16 = sadd.s32 1, %s12
    $region7: #{tpu_custom_call.1} parent=1 // loop_footer_branch
      %11 = sbr.rel target = $region3
    $region8: #{tpu_custom_call.1} parent=1 // loop_exit
      _
    %2288 = vsyncpa [#allocation3], 1
    %s2289 = scalar_lea.sflag [#allocation3], 1
    %2290 = vsyncpa %s2289, 1

</llo_original>
